<compile_context>
chip_gen: v7x
topology: tpu7x:2x2x1
jax: 0.10.0
libtpu: 0.0.40
codegen_flags: <defaults>
</compile_context>

<pallas_src>
import jax
import jax.numpy as jnp
from jax import lax
from jax.experimental import pallas as pl
from jax.experimental.pallas import tpu as pltpu

BN_EPS = 1e-5
LANE = 128
SUBLANE_BF16 = 16  # bf16 packs 16 rows per vreg sublane group


def _round_up(x, m):
    return (x + m - 1) // m * m


# ---------------------------------------------------------------------------
# Pass 1: tiled MXU matmul (im2col conv) + per-tile partial BN statistics.
# ---------------------------------------------------------------------------
def _matmul_stats_kernel(p_ref, w_ref, conv_ref, stats_ref):
    # (TILE_M, K_pad) bf16 @ (K_pad, C_pad) bf16 -> f32 on the MXU.
    conv = jnp.dot(p_ref[...], w_ref[...], preferred_element_type=jnp.float32)
    conv_ref[...] = conv
    # Per-channel partial sums for BatchNorm batch statistics (kept in f32).
    csum = jnp.sum(conv, axis=0, keepdims=True)            # (1, C_pad)
    csq = jnp.sum(conv * conv, axis=0, keepdims=True)      # (1, C_pad)
    stats_ref[...] = jnp.concatenate([csum, csq], axis=0)  # (2, C_pad)


# ---------------------------------------------------------------------------
# Pass 2: elementwise y = max(conv * scale + shift, 0)  (one FMA + max / voxel).
# ---------------------------------------------------------------------------
def _bn_relu_kernel(conv_ref, scale_ref, shift_ref, out_ref):
    out_ref[...] = jnp.maximum(
        conv_ref[...] * scale_ref[...] + shift_ref[...], 0.0)


def _im2col_3d(x_ncdhw):
    """(N, C, D, H, W) -> (N*D*H*W, 27*C) patches for kernel 3, stride 1, pad 1."""
    n, c, d, h, w = x_ncdhw.shape
    x_ndhwc = jnp.transpose(x_ncdhw, (0, 2, 3, 4, 1))            # N, D, H, W, C
    xp = jnp.pad(x_ndhwc, ((0, 0), (1, 1), (1, 1), (1, 1), (0, 0)))
    cols = []
    for kd in range(3):
        for kh in range(3):
            for kw in range(3):
                cols.append(xp[:, kd:kd + d, kh:kh + h, kw:kw + w, :])
    patches = jnp.stack(cols, axis=-2)                           # N,D,H,W,27,C
    return patches.reshape(n * d * h * w, 27 * c)


def conv_bn_relu(x_ncdhw, conv_weight, gamma, beta, *,
                 tile_m=512, compute_dtype=jnp.bfloat16):
    """Forward matching ConvBnReLU (k=3, s=1, p=1, bias=False; training-mode BN)."""
    n, c_in, d, h, w = x_ncdhw.shape
    c_out = conv_weight.shape[0]
    m = n * d * h * w
    k = 27 * c_in

    # Padded / tiled sizes: lane-dense K and C_out, sublane-aligned M tiles.
    k_pad = _round_up(k, LANE)
    c_pad = _round_up(c_out, LANE)
    tile_m = max(SUBLANE_BF16, min(tile_m, _round_up(m, SUBLANE_BF16)))
    tile_m = _round_up(tile_m, SUBLANE_BF16)
    m_pad = _round_up(m, tile_m)
    num_tiles = m_pad // tile_m
    itemsize = jnp.dtype(compute_dtype).itemsize

    # im2col + zero padding (padded rows/cols contribute 0 to matmul & stats).
    patches = _im2col_3d(x_ncdhw.astype(jnp.float32))
    patches = jnp.pad(patches, ((0, m_pad - m), (0, k_pad - k))).astype(compute_dtype)

    # (C_out, C_in, kd, kh, kw) -> (kd, kh, kw, C_in, C_out) -> (K_pad, C_pad).
    w_flat = jnp.transpose(conv_weight, (2, 3, 4, 1, 0)).reshape(k, c_out)
    w_flat = jnp.pad(w_flat.astype(jnp.float32),
                     ((0, k_pad - k), (0, c_pad - c_out))).astype(compute_dtype)

    compiler_params = pltpu.CompilerParams(
        dimension_semantics=("parallel",),
        vmem_limit_bytes=48 * 1024 * 1024,
    )

    # ---- Pass 1: tiled conv matmul + per-tile BN partial stats -------------
    conv_flat, partial_stats = pl.pallas_call(
        _matmul_stats_kernel,
        grid=(num_tiles,),
        in_specs=[
            pl.BlockSpec((tile_m, k_pad), lambda i: (i, 0)),
            pl.BlockSpec((k_pad, c_pad), lambda i: (0, 0)),
        ],
        out_specs=[
            pl.BlockSpec((tile_m, c_pad), lambda i: (i, 0)),
            pl.BlockSpec((None, 2, c_pad), lambda i: (i, 0, 0)),
        ],
        out_shape=[
            jax.ShapeDtypeStruct((m_pad, c_pad), jnp.float32),
            jax.ShapeDtypeStruct((num_tiles, 2, c_pad), jnp.float32),
        ],
        compiler_params=compiler_params,
        cost_estimate=pl.CostEstimate(
            flops=2 * m_pad * k_pad * c_pad,
            transcendentals=0,
            bytes_accessed=(m_pad * k_pad * itemsize
                            + k_pad * c_pad * itemsize
                            + m_pad * c_pad * 4
                            + num_tiles * 2 * c_pad * 4)),
    )(patches, w_flat)

    # ---- BN batch statistics (biased var, over all N*D*H*W voxels) ---------
    stats = jnp.sum(partial_stats, axis=0)          # (2, C_pad), f32
    mean = stats[0] / m                             # padded rows contributed 0
    var = stats[1] / m - mean * mean                # E[x^2]-E[x]^2, f32 path
    gamma_pad = jnp.pad(gamma.astype(jnp.float32), (0, c_pad - c_out))
    beta_pad = jnp.pad(beta.astype(jnp.float32), (0, c_pad - c_out))
    scale = (gamma_pad * lax.rsqrt(var + BN_EPS)).reshape(1, c_pad)
    shift = (beta_pad - mean * scale[0]).reshape(1, c_pad)

    # ---- Pass 2: normalize + scale/shift + ReLU (lane-dense, tiled) --------
    out_flat = pl.pallas_call(
        _bn_relu_kernel,
        grid=(num_tiles,),
        in_specs=[
            pl.BlockSpec((tile_m, c_pad), lambda i: (i, 0)),
            pl.BlockSpec((1, c_pad), lambda i: (0, 0)),
            pl.BlockSpec((1, c_pad), lambda i: (0, 0)),
        ],
        out_specs=pl.BlockSpec((tile_m, c_pad), lambda i: (i, 0)),
        out_shape=jax.ShapeDtypeStruct((m_pad, c_pad), jnp.float32),
        compiler_params=compiler_params,
        cost_estimate=pl.CostEstimate(
            flops=2 * m_pad * c_pad,
            transcendentals=0,
            bytes_accessed=2 * m_pad * c_pad * 4 + 2 * c_pad * 4),
    )(conv_flat, scale, shift)

    # (M_pad, C_pad) -> (N, D, H, W, C_out) -> NCDHW
    out = out_flat[:m, :c_out].reshape(n, d, h, w, c_out)
    return jnp.transpose(out, (0, 4, 1, 2, 3))


def reference(x_ncdhw, conv_weight, gamma, beta):
    """Plain-JAX reference (conv inputs quantized to bf16 like the kernel path)."""
    xq = x_ncdhw.astype(jnp.bfloat16).astype(jnp.float32)
    wq = conv_weight.astype(jnp.bfloat16).astype(jnp.float32)
    conv = lax.conv_general_dilated(
        xq, wq, window_strides=(1, 1, 1), padding=((1, 1), (1, 1), (1, 1)),
        dimension_numbers=("NCDHW", "OIDHW", "NCDHW"))
    mean = jnp.mean(conv, axis=(0, 2, 3, 4), keepdims=True)
    var = jnp.mean((conv - mean) ** 2, axis=(0, 2, 3, 4), keepdims=True)
    g = gamma.reshape(1, -1, 1, 1, 1).astype(jnp.float32)
    b = beta.reshape(1, -1, 1, 1, 1).astype(jnp.float32)
    return jnp.maximum((conv - mean) * lax.rsqrt(var + BN_EPS) * g + b, 0.0)


if __name__ == "__main__":
    key = jax.random.PRNGKey(0)
    k_x, k_w, k_g, k_b = jax.random.split(key, 4)

    N, C_IN, C_OUT, D, H, W = 2, 4, 8, 8, 8, 8
    x = jax.random.normal(k_x, (N, C_IN, D, H, W), dtype=jnp.float32)
    conv_weight = jax.random.normal(k_w, (C_OUT, C_IN, 3, 3, 3), dtype=jnp.float32) * 0.1
    gamma = jax.random.normal(k_g, (C_OUT,), dtype=jnp.float32) * 0.1 + 1.0
    beta = jax.random.normal(k_b, (C_OUT,), dtype=jnp.float32) * 0.1

    out = jax.jit(conv_bn_relu)(x, conv_weight, gamma, beta)
    jax.block_until_ready(out)

    ref = reference(x, conv_weight, gamma, beta)
    assert out.shape == (N, C_OUT, D, H, W)
    max_err = jnp.max(jnp.abs(out - ref))
    assert jnp.allclose(out, ref, atol=2e-3, rtol=2e-3), max_err

    print("KERNEL_OK")
</pallas_src>

<mosaic_0001>
module attributes {stable_mosaic.version = 11 : i64} {
  func.func @_matmul_stats_kernel(%arg0: i32, %arg1: memref<512x128xbf16, #tpu.memory_space<vmem>>, %arg2: memref<128x128xbf16, #tpu.memory_space<vmem>>, %arg3: memref<512x128xf32, #tpu.memory_space<vmem>>, %arg4: memref<1x2x128xf32, #tpu.memory_space<vmem>>) attributes {dimension_semantics = [#tpu.dimension_semantics<parallel>], iteration_bounds = array<i64: 2>, scalar_prefetch = 0 : i64, scratch_operands = 0 : i64, tpu.core_type = #tpu.core_type<tc>, window_params = [{transform_indices = @transform_0, window_bounds = array<i64: 512, 128>}, {pipeline_mode = #tpu.pipeline_mode<synchronous>, transform_indices = @transform_1, window_bounds = array<i64: 128, 128>}, {transform_indices = @transform_2, window_bounds = array<i64: 512, 128>}, {transform_indices = @transform_3, window_bounds = array<i64: 1, 2, 128>}]} {
    %c0 = arith.constant 0 : index
    %c0_0 = arith.constant 0 : index
    %0 = vector.load %arg1[%c0, %c0_0] : memref<512x128xbf16, #tpu.memory_space<vmem>>, vector<512x128xbf16>
    %c0_1 = arith.constant 0 : index
    %c0_2 = arith.constant 0 : index
    %1 = vector.load %arg2[%c0_1, %c0_2] : memref<128x128xbf16, #tpu.memory_space<vmem>>, vector<128x128xbf16>
    %cst = arith.constant dense<0.000000e+00> : vector<512x128xf32>
    %2 = tpu.matmul %0, %1, %cst {dimension_numbers = #tpu.dot_dimension_numbers<[1], [0], [0], [1], [0, 0, 1, 1], [], []>} : vector<512x128xbf16>, vector<128x128xbf16>, vector<512x128xf32> -> vector<512x128xf32>
    %c0_3 = arith.constant 0 : index
    %c0_4 = arith.constant 0 : index
    %3 = vector.load %arg3[%c0_3, %c0_4] : memref<512x128xf32, #tpu.memory_space<vmem>>, vector<512x128xf32>
    tpu.vector_store %arg3[%c0_3, %c0_4], %2 {strides = array<i32>} : memref<512x128xf32, #tpu.memory_space<vmem>>, vector<512x128xf32>,
    %cst_5 = arith.constant dense<0.000000e+00> : vector<128xf32>
    %4 = vector.multi_reduction <add>, %2, %cst_5 [0] : vector<512x128xf32> to vector<128xf32>
    %5 = vector.shape_cast %4 : vector<128xf32> to vector<1x128xf32>
    %6 = arith.mulf %2, %2 : vector<512x128xf32>
    %cst_6 = arith.constant dense<0.000000e+00> : vector<128xf32>
    %7 = vector.multi_reduction <add>, %6, %cst_6 [0] : vector<512x128xf32> to vector<128xf32>
    %8 = vector.shape_cast %7 : vector<128xf32> to vector<1x128xf32>
    %9 = tpu.concatenate %5, %8 in 0 : vector<1x128xf32>, vector<1x128xf32> -> vector<2x128xf32>
    %c0_7 = arith.constant 0 : index
    %c0_8 = arith.constant 0 : index
    %c0_9 = arith.constant 0 : index
    %10 = vector.load %arg4[%c0_7, %c0_8, %c0_9] : memref<1x2x128xf32, #tpu.memory_space<vmem>>, vector<1x2x128xf32>
    %11 = vector.shape_cast %10 : vector<1x2x128xf32> to vector<2x128xf32>
    %12 = vector.shape_cast %9 : vector<2x128xf32> to vector<1x2x128xf32>
    tpu.vector_store %arg4[%c0_7, %c0_8, %c0_9], %12 {strides = array<i32>} : memref<1x2x128xf32, #tpu.memory_space<vmem>>, vector<1x2x128xf32>,
    return
  }
  func.func @transform_0(%arg0: i32) -> (i32, i32) {
    %c0_i32 = arith.constant 0 : i32
    %c0_i32_0 = arith.constant 0 : i32
    return %arg0, %c0_i32 : i32, i32
  }
  func.func @transform_1(%arg0: i32) -> (i32, i32) {
    %c0_i32 = arith.constant 0 : i32
    %c0_i32_0 = arith.constant 0 : i32
    %c0_i32_1 = arith.constant 0 : i32
    return %c0_i32, %c0_i32_0 : i32, i32
  }
  func.func @transform_2(%arg0: i32) -> (i32, i32) {
    %c0_i32 = arith.constant 0 : i32
    %c0_i32_0 = arith.constant 0 : i32
    return %arg0, %c0_i32 : i32, i32
  }
  func.func @transform_3(%arg0: i32) -> (i32, i32, i32) {
    %c0_i32 = arith.constant 0 : i32
    %c0_i32_0 = arith.constant 0 : i32
    %c0_i32_1 = arith.constant 0 : i32
    return %arg0, %c0_i32, %c0_i32_0 : i32, i32, i32
  }
}

module attributes {stable_mosaic.version = 11 : i64} {
  func.func @_bn_relu_kernel(%arg0: i32, %arg1: memref<512x128xf32, #tpu.memory_space<vmem>>, %arg2: memref<1x128xf32, #tpu.memory_space<vmem>>, %arg3: memref<1x128xf32, #tpu.memory_space<vmem>>, %arg4: memref<512x128xf32, #tpu.memory_space<vmem>>) attributes {dimension_semantics = [#tpu.dimension_semantics<parallel>], iteration_bounds = array<i64: 2>, scalar_prefetch = 0 : i64, scratch_operands = 0 : i64, tpu.core_type = #tpu.core_type<tc>, window_params = [{transform_indices = @transform_0, window_bounds = array<i64: 512, 128>}, {pipeline_mode = #tpu.pipeline_mode<synchronous>, transform_indices = @transform_1, window_bounds = array<i64: 1, 128>}, {pipeline_mode = #tpu.pipeline_mode<synchronous>, transform_indices = @transform_2, window_bounds = array<i64: 1, 128>}, {transform_indices = @transform_3, window_bounds = array<i64: 512, 128>}]} {
    %c0 = arith.constant 0 : index
    %c0_0 = arith.constant 0 : index
    %0 = vector.load %arg1[%c0, %c0_0] : memref<512x128xf32, #tpu.memory_space<vmem>>, vector<512x128xf32>
    %c0_1 = arith.constant 0 : index
    %c0_2 = arith.constant 0 : index
    %1 = vector.load %arg2[%c0_1, %c0_2] : memref<1x128xf32, #tpu.memory_space<vmem>>, vector<1x128xf32>
    %2 = vector.broadcast %1 : vector<1x128xf32> to vector<512x128xf32>
    %3 = arith.mulf %0, %2 : vector<512x128xf32>
    %c0_3 = arith.constant 0 : index
    %c0_4 = arith.constant 0 : index
    %4 = vector.load %arg3[%c0_3, %c0_4] : memref<1x128xf32, #tpu.memory_space<vmem>>, vector<1x128xf32>
    %5 = vector.broadcast %4 : vector<1x128xf32> to vector<512x128xf32>
    %6 = arith.addf %3, %5 : vector<512x128xf32>
    %cst = arith.constant 0.000000e+00 : f32
    %7 = vector.broadcast %cst : f32 to vector<512x128xf32>
    %8 = arith.maximumf %6, %7 : vector<512x128xf32>
    %c0_5 = arith.constant 0 : index
    %c0_6 = arith.constant 0 : index
    %9 = vector.load %arg4[%c0_5, %c0_6] : memref<512x128xf32, #tpu.memory_space<vmem>>, vector<512x128xf32>
    tpu.vector_store %arg4[%c0_5, %c0_6], %8 {strides = array<i32>} : memref<512x128xf32, #tpu.memory_space<vmem>>, vector<512x128xf32>,
    return
  }
  func.func @transform_0(%arg0: i32) -> (i32, i32) {
    %c0_i32 = arith.constant 0 : i32
    %c0_i32_0 = arith.constant 0 : i32
    return %arg0, %c0_i32 : i32, i32
  }
  func.func @transform_1(%arg0: i32) -> (i32, i32) {
    %c0_i32 = arith.constant 0 : i32
    %c0_i32_0 = arith.constant 0 : i32
    %c0_i32_1 = arith.constant 0 : i32
    return %c0_i32, %c0_i32_0 : i32, i32
  }
  func.func @transform_2(%arg0: i32) -> (i32, i32) {
    %c0_i32 = arith.constant 0 : i32
    %c0_i32_0 = arith.constant 0 : i32
    %c0_i32_1 = arith.constant 0 : i32
    return %c0_i32, %c0_i32_0 : i32, i32
  }
  func.func @transform_3(%arg0: i32) -> (i32, i32) {
    %c0_i32 = arith.constant 0 : i32
    %c0_i32_0 = arith.constant 0 : i32
    return %arg0, %c0_i32 : i32, i32
  }
}

</mosaic_0001>

<llo_original>
// kernel: conv_bn_relu.3
$region0: #{conv_bn_relu.3}
  #allocation0 [shape = 'u32[]', space=smem, size = 0x4, offset = 0x4, fixed_abs, tag = 'smem constant byte address 0x4 - core index']
  #allocation1 [shape = 'u32[144,128]{1,0:T(1,128)}', space=vmem, size = 0x12000, scoped, tag = 'internal scratch']
  %s0 = inlined_call_operand.vmem [shape: f32[1024,128], index: 0, kind: input, shape index: {}]
  %s1 = inlined_call_operand.vmem [shape: f32[1,128], index: 1, kind: input, shape index: {}]
  %s2 = inlined_call_operand.vmem [shape: f32[1,128], index: 2, kind: input, shape index: {}]
  %s3 = inlined_call_operand.vmem [shape: f32[1024,128], index: 3, kind: output, shape index: {}]
  %s4 = sld [smem:[#allocation0]]
  $region45: #{conv_bn_relu.3} parent=0
    _
  %s6 = ssub.s32 1, %s4
  %s7 = scalar_select 0, %s6, %s4
  loop: start=0, step=1, limit=4
  $region2: #{conv_bn_relu.3} parent=0 // loop_pre_header
    _
  $region3: #{conv_bn_relu.3} parent=0 // loop_header
    %s9 = sphi 0, %s13
    %p10 = scmp.ge.s32.totalorder %s9, 4
    %s19 = sphi 0, %s21
    %s22 = sphi 0, %s19
    %s23 = sphi 0, %s22
    %s39 = sphi 0, %s23
    %s43 = sphi 0, %s43
    %s45 = sphi 0, %s43
    %s46 = sphi 0, %s45
    %s60 = sphi 0, %s46
    %s64 = sphi 0, %s64
    %s66 = sphi 0, %s64
    %s67 = sphi 0, %s66
    %s81 = sphi 0, %s67
    %s87 = sphi 0, %s89
    %s90 = sphi 0, %s87
    %s91 = sphi 0, %s90
    %s107 = sphi 0, %s91
  $region4: #{conv_bn_relu.3} parent=0 // loop_header_branch
    %12 = sbr.rel (%p10) target = $region8
  $region5: #{conv_bn_relu.3} parent=0 // loop_body
    %s14 = ssub.s32 %s9, 1
    %s15 = ssub.s32 %s9, 2
    %s16 = sadd.s32 %s9, 1
    %s17 = ssub.s32 %s9, %s16
    %p18 = scmp.eq.s32.totalorder %s17, 0
    %s20 = sadd.s32 %s19, 1
    %s21 = scalar_select %p18, %s19, %s20
    %p24 = pneg %p18
    %p25 = scmp.eq.s32.totalorder %s9, 1
    %p26 = por %p24, %p25
    %p27 = scmp.ne.s32.totalorder %s19, %s22
    %p28 = scmp.eq.s32.totalorder %s9, 0
    %p29 = por %p27, %p28
    %p30 = scmp.ne.s32.totalorder %s19, %s22
    %p31 = scmp.eq.s32.totalorder %s14, 1
    %p32 = por %p30, %p31
    %p33 = scmp.ne.s32.totalorder %s22, %s23
    %p34 = scmp.eq.s32.totalorder %s14, 0
    %p35 = por %p33, %p34
    %p36 = scmp.ne.s32.totalorder %s22, %s23
    %p37 = scmp.eq.s32.totalorder %s15, 1
    %p38 = por %p36, %p37
    %p40 = scmp.ne.s32.totalorder %s23, %s39
    %p41 = scmp.eq.s32.totalorder %s15, 0
    %p42 = por %p40, %p41
    %s44 = sadd.s32 %s43, 1
    %p47 = scmp.eq.s32.totalorder %s9, 1
    %p48 = scmp.ne.s32.totalorder %s43, %s45
    %p49 = scmp.eq.s32.totalorder %s9, 0
    %p50 = por %p48, %p49
    %p51 = scmp.ne.s32.totalorder %s43, %s45
    %p52 = scmp.eq.s32.totalorder %s14, 1
    %p53 = por %p51, %p52
    %p54 = scmp.ne.s32.totalorder %s45, %s46
    %p55 = scmp.eq.s32.totalorder %s14, 0
    %p56 = por %p54, %p55
    %p57 = scmp.ne.s32.totalorder %s45, %s46
    %p58 = scmp.eq.s32.totalorder %s15, 1
    %p59 = por %p57, %p58
    %p61 = scmp.ne.s32.totalorder %s46, %s60
    %p62 = scmp.eq.s32.totalorder %s15, 0
    %p63 = por %p61, %p62
    %s65 = sadd.s32 %s64, 1
    %p68 = scmp.eq.s32.totalorder %s9, 1
    %p69 = scmp.ne.s32.totalorder %s64, %s66
    %p70 = scmp.eq.s32.totalorder %s9, 0
    %p71 = por %p69, %p70
    %p72 = scmp.ne.s32.totalorder %s64, %s66
    %p73 = scmp.eq.s32.totalorder %s14, 1
    %p74 = por %p72, %p73
    %p75 = scmp.ne.s32.totalorder %s66, %s67
    %p76 = scmp.eq.s32.totalorder %s14, 0
    %p77 = por %p75, %p76
    %p78 = scmp.ne.s32.totalorder %s66, %s67
    %p79 = scmp.eq.s32.totalorder %s15, 1
    %p80 = por %p78, %p79
    %p82 = scmp.ne.s32.totalorder %s67, %s81
    %p83 = scmp.eq.s32.totalorder %s15, 0
    %p84 = por %p82, %p83
    %s85 = ssub.s32 %s9, %s16
    %p86 = scmp.eq.s32.totalorder %s85, 0
    %s88 = sadd.s32 %s87, 1
    %s89 = scalar_select %p86, %s87, %s88
    %p92 = pneg %p86
    %p93 = scmp.eq.s32.totalorder %s9, 1
    %p94 = por %p92, %p93
    %p95 = scmp.ne.s32.totalorder %s87, %s90
    %p96 = scmp.eq.s32.totalorder %s9, 0
    %p97 = por %p95, %p96
    %p98 = scmp.ne.s32.totalorder %s87, %s90
    %p99 = scmp.eq.s32.totalorder %s14, 1
    %p100 = por %p98, %p99
    %p101 = scmp.ne.s32.totalorder %s90, %s91
    %p102 = scmp.eq.s32.totalorder %s14, 0
    %p103 = por %p101, %p102
    %p104 = scmp.ne.s32.totalorder %s90, %s91
    %p105 = scmp.eq.s32.totalorder %s15, 1
    %p106 = por %p104, %p105
    %p108 = scmp.ne.s32.totalorder %s91, %s107
    %p109 = scmp.eq.s32.totalorder %s15, 0
    %p110 = por %p108, %p109
    %p111 = scmp.le.s32.totalorder 1, %s9
    %p112 = scmp.lt.s32.totalorder %s9, 3
    %p113 = pnand %p111, %p112
    %p114 = pneg %p113
    // Predicated region
    $region9: #{conv_bn_relu.3} parent=5 // pred_check
      _
    $region10: #{conv_bn_relu.3} parent=5 // pred_check_branch
      %116 = sbr.rel (%p113) target = $region12
    $region11: #{conv_bn_relu.3} parent=5 // pred_region
      %s117 = ssub.s32 %s9, 1
      // Predicated region
      $region13: #{conv_bn_relu.3} parent=11 // pred_check
        %p118 = pneg %p56
      $region14: #{conv_bn_relu.3} parent=11 // pred_check_branch
        %120 = sbr.rel (%p118) target = $region16
      $region15: #{conv_bn_relu.3} parent=11 // pred_region
        _
      $region16: #{conv_bn_relu.3} parent=11 // pred_fallthru
        _
      // Predicated region
      $region17: #{conv_bn_relu.3} parent=11 // pred_check
        %p121 = pneg %p77
      $region18: #{conv_bn_relu.3} parent=11 // pred_check_branch
        %123 = sbr.rel (%p121) target = $region20
      $region19: #{conv_bn_relu.3} parent=11 // pred_region
        _
      $region20: #{conv_bn_relu.3} parent=11 // pred_fallthru
        _
    $region12: #{conv_bn_relu.3} parent=5 // pred_fallthru
      _
    %p124 = scmp.lt.s32.totalorder %s9, 2
    // Predicated region
    $region21: #{conv_bn_relu.3} parent=5 // pred_check
      %p125 = pneg %p124
    $region22: #{conv_bn_relu.3} parent=5 // pred_check_branch
      %127 = sbr.rel (%p125) target = $region24
    $region23: #{conv_bn_relu.3} parent=5 // pred_region
      // Predicated region
      $region25: #{conv_bn_relu.3} parent=23 // pred_check
        %p128 = pneg %p29
      $region26: #{conv_bn_relu.3} parent=23 // pred_check_branch
        %130 = sbr.rel (%p128) target = $region28
      $region27: #{conv_bn_relu.3} parent=23 // pred_region
        %s131 = smul.u32 64, %s9
        %p132 = scmp.lt.s32.totalorder %s131, 127
        %s133 = scalar_select %p132, %s131, 127
        %s134 = smul.addr %s133, 8
        %s135 = scalar_lea.vmem %s0, %s134
        %s136 = smul.u32 64, %s9
      $region28: #{conv_bn_relu.3} parent=23 // pred_fallthru
        _
    $region24: #{conv_bn_relu.3} parent=5 // pred_fallthru
      _
    %p137 = scmp.le.s32.totalorder 1, %s9
    %p138 = scmp.lt.s32.totalorder %s9, 3
    %p139 = pnand %p137, %p138
    %p140 = pneg %p139
    // Predicated region
    $region29: #{conv_bn_relu.3} parent=5 // pred_check
      _
    $region30: #{conv_bn_relu.3} parent=5 // pred_check_branch
      %142 = sbr.rel (%p139) target = $region32
    $region31: #{conv_bn_relu.3} parent=5 // pred_region
      %s143 = ssub.s32 %s9, 1
      %s144 = smul.u32 64, %s14
      %p145 = scmp.lt.s32.totalorder %s144, 127
      %s146 = scalar_select %p145, %s144, 127
      %s147 = smul.addr %s146, 8
      %s148 = scalar_lea.vmem %s0, %s147
      %p149 = pneg %p35
      %p150 = pneg %p32
      %p151 = pneg %p56
      %p152 = pneg %p53
      %p153 = pneg %p77
      %p154 = pneg %p74
      %p155 = pneg %p103
      %p156 = pneg %p100
      %s157 = smul.u32 64, %s14
      %p158 = scmp.lt.s32.totalorder %s157, 127
      %s159 = scalar_select %p158, %s157, 127
      %s160 = smul.addr %s159, 8
      %s161 = scalar_lea.vmem %s3, %s160
      %s162 = smul.u32 64, %s14
      %p163 = scmp.lt.s32.totalorder %s162, 127
      %s164 = scalar_select %p163, %s162, 127
      %s165 = smul.addr %s164, 8
      %s166 = scalar_lea.vmem %s0, %s165
      %s167 = smul.u32 64, %s14
      %s168 = smul.u32 64, %s14
      %p169 = scmp.lt.s32.totalorder %s168, 127
      %s170 = scalar_select %p169, %s168, 127
      %s171 = smul.addr %s170, 8
      %s172 = scalar_lea.vmem %s3, %s171
      %s173 = smul.u32 64, %s14
      %v174 = vld [vmem:[%s166] sm:$0xff]
      %v175 = vld [vmem:[%s166 + $0x8] sm:$0xff]
      %v176 = vld [vmem:[%s166 + $0x10] sm:$0xff]
      %v177 = vld [vmem:[%s166 + $0x18] sm:$0xff]
      %v178 = vld [vmem:[%s166 + $0x20] sm:$0xff]
      %v179 = vld [vmem:[%s166 + $0x28] sm:$0xff]
      %v180 = vld [vmem:[%s166 + $0x30] sm:$0xff]
      %v181 = vld [vmem:[%s166 + $0x38] sm:$0xff]
      %v182 = vld [vmem:[%s166 + $0x40] sm:$0xff]
      %v183 = vld [vmem:[%s166 + $0x48] sm:$0xff]
      %v184 = vld [vmem:[%s166 + $0x50] sm:$0xff]
      %v185 = vld [vmem:[%s166 + $0x58] sm:$0xff]
      %v186 = vld [vmem:[%s166 + $0x60] sm:$0xff]
      %v187 = vld [vmem:[%s166 + $0x68] sm:$0xff]
      %v188 = vld [vmem:[%s166 + $0x70] sm:$0xff]
      %v189 = vld [vmem:[%s166 + $0x78] sm:$0xff]
      %v190 = vld [vmem:[%s166 + $0x80] sm:$0xff]
      %v191 = vld [vmem:[%s166 + $0x88] sm:$0xff]
      %v192 = vld [vmem:[%s166 + $0x90] sm:$0xff]
      %v193 = vld [vmem:[%s166 + $0x98] sm:$0xff]
      %v194 = vld [vmem:[%s166 + $0xa0] sm:$0xff]
      %v195 = vld [vmem:[%s166 + $0xa8] sm:$0xff]
      %v196 = vld [vmem:[%s166 + $0xb0] sm:$0xff]
      %v197 = vld [vmem:[%s166 + $0xb8] sm:$0xff]
      %v198 = vld [vmem:[%s166 + $0xc0] sm:$0xff]
      %v199 = vld [vmem:[%s166 + $0xc8] sm:$0xff]
      %v200 = vld [vmem:[%s166 + $0xd0] sm:$0xff]
      %v201 = vld [vmem:[%s166 + $0xd8] sm:$0xff]
      %v202 = vld [vmem:[%s166 + $0xe0] sm:$0xff]
      %v203 = vld [vmem:[%s166 + $0xe8] sm:$0xff]
      %v204 = vld [vmem:[%s166 + $0xf0] sm:$0xff]
      %v205 = vld [vmem:[%s166 + $0xf8] sm:$0xff]
      %v206 = vld [vmem:[%s166 + $0x100] sm:$0xff]
      %v207 = vld [vmem:[%s166 + $0x108] sm:$0xff]
      %v208 = vld [vmem:[%s166 + $0x110] sm:$0xff]
      %v209 = vld [vmem:[%s166 + $0x118] sm:$0xff]
      %v210 = vld [vmem:[%s166 + $0x120] sm:$0xff]
      %v211 = vld [vmem:[%s166 + $0x128] sm:$0xff]
      %v212 = vld [vmem:[%s166 + $0x130] sm:$0xff]
      %v213 = vld [vmem:[%s166 + $0x138] sm:$0xff]
      %v214 = vld [vmem:[%s166 + $0x140] sm:$0xff]
      %v215 = vld [vmem:[%s166 + $0x148] sm:$0xff]
      %v216 = vld [vmem:[%s166 + $0x150] sm:$0xff]
      %v217 = vld [vmem:[%s166 + $0x158] sm:$0xff]
      %v218 = vld [vmem:[%s166 + $0x160] sm:$0xff]
      %v219 = vld [vmem:[%s166 + $0x168] sm:$0xff]
      %v220 = vld [vmem:[%s166 + $0x170] sm:$0xff]
      %v221 = vld [vmem:[%s166 + $0x178] sm:$0xff]
      %v222 = vld [vmem:[%s166 + $0x180] sm:$0xff]
      %v223 = vld [vmem:[%s166 + $0x188] sm:$0xff]
      %v224 = vld [vmem:[%s166 + $0x190] sm:$0xff]
      %v225 = vld [vmem:[%s166 + $0x198] sm:$0xff]
      %v226 = vld [vmem:[%s166 + $0x1a0] sm:$0xff]
      %v227 = vld [vmem:[%s166 + $0x1a8] sm:$0xff]
      %v228 = vld [vmem:[%s166 + $0x1b0] sm:$0xff]
      %v229 = vld [vmem:[%s166 + $0x1b8] sm:$0xff]
      %v230 = vld [vmem:[%s166 + $0x1c0] sm:$0xff]
      %v231 = vld [vmem:[%s166 + $0x1c8] sm:$0xff]
      %v232 = vld [vmem:[%s166 + $0x1d0] sm:$0xff]
      %v233 = vld [vmem:[%s166 + $0x1d8] sm:$0xff]
      %v234 = vld [vmem:[%s166 + $0x1e0] sm:$0xff]
      %v235 = vld [vmem:[%s166 + $0x1e8] sm:$0xff]
      %v236 = vld [vmem:[%s166 + $0x1f0] sm:$0xff]
      %v237 = vld [vmem:[%s166 + $0x1f8] sm:$0xff]
      %v238 = vld [vmem:[%s1] sm:$0x1]
      %v240 = vlaneseq
      %v241 = vshrl.u32 %v240, 7
      %v242 = vsub.s32 0, %v241
      %v243 = vrot.slane %v238, %v242
      %v245 = vmul.f32 %v174, %v243
      %v246 = vmul.f32 %v175, %v243
      %v247 = vmul.f32 %v176, %v243
      %v248 = vmul.f32 %v177, %v243
      %v249 = vmul.f32 %v178, %v243
      %v250 = vmul.f32 %v179, %v243
      %v251 = vmul.f32 %v180, %v243
      %v252 = vmul.f32 %v181, %v243
      %v253 = vmul.f32 %v182, %v243
      %v254 = vmul.f32 %v183, %v243
      %v255 = vmul.f32 %v184, %v243
      %v256 = vmul.f32 %v185, %v243
      %v257 = vmul.f32 %v186, %v243
      %v258 = vmul.f32 %v187, %v243
      %v259 = vmul.f32 %v188, %v243
      %v260 = vmul.f32 %v189, %v243
      %v261 = vmul.f32 %v190, %v243
      %v262 = vmul.f32 %v191, %v243
      %v263 = vmul.f32 %v192, %v243
      %v264 = vmul.f32 %v193, %v243
      %v265 = vmul.f32 %v194, %v243
      %v266 = vmul.f32 %v195, %v243
      %v267 = vmul.f32 %v196, %v243
      %v268 = vmul.f32 %v197, %v243
      %v269 = vmul.f32 %v198, %v243
      %v270 = vmul.f32 %v199, %v243
      %v271 = vmul.f32 %v200, %v243
      %v272 = vmul.f32 %v201, %v243
      %v273 = vmul.f32 %v202, %v243
      %v274 = vmul.f32 %v203, %v243
      %v275 = vmul.f32 %v204, %v243
      %v276 = vmul.f32 %v205, %v243
      %v277 = vmul.f32 %v206, %v243
      %v278 = vmul.f32 %v207, %v243
      %v279 = vmul.f32 %v208, %v243
      %v280 = vmul.f32 %v209, %v243
      %v281 = vmul.f32 %v210, %v243
      %v282 = vmul.f32 %v211, %v243
      %v283 = vmul.f32 %v212, %v243
      %v284 = vmul.f32 %v213, %v243
      %v285 = vmul.f32 %v214, %v243
      %v286 = vmul.f32 %v215, %v243
      %v287 = vmul.f32 %v216, %v243
      %v288 = vmul.f32 %v217, %v243
      %v289 = vmul.f32 %v218, %v243
      %v290 = vmul.f32 %v219, %v243
      %v291 = vmul.f32 %v220, %v243
      %v292 = vmul.f32 %v221, %v243
      %v293 = vmul.f32 %v222, %v243
      %v294 = vmul.f32 %v223, %v243
      %v295 = vmul.f32 %v224, %v243
      %v296 = vmul.f32 %v225, %v243
      %v297 = vmul.f32 %v226, %v243
      %v298 = vmul.f32 %v227, %v243
      %v299 = vmul.f32 %v228, %v243
      %v300 = vmul.f32 %v229, %v243
      %v301 = vmul.f32 %v230, %v243
      %v302 = vmul.f32 %v231, %v243
      %v303 = vmul.f32 %v232, %v243
      %v304 = vmul.f32 %v233, %v243
      %v305 = vmul.f32 %v234, %v243
      %v306 = vmul.f32 %v235, %v243
      %v307 = vmul.f32 %v236, %v243
      %v308 = vmul.f32 %v237, %v243
      %v309 = vld [vmem:[%s2] sm:$0x1]
      %v311 = vlaneseq
      %v312 = vshrl.u32 %v311, 7
      %v313 = vsub.s32 0, %v312
      %v314 = vrot.slane %v309, %v313
      %v316 = vadd.f32 %v245, %v314
      %v317 = vadd.f32 %v246, %v314
      %v318 = vadd.f32 %v247, %v314
      %v319 = vadd.f32 %v248, %v314
      %v320 = vadd.f32 %v249, %v314
      %v321 = vadd.f32 %v250, %v314
      %v322 = vadd.f32 %v251, %v314
      %v323 = vadd.f32 %v252, %v314
      %v324 = vadd.f32 %v253, %v314
      %v325 = vadd.f32 %v254, %v314
      %v326 = vadd.f32 %v255, %v314
      %v327 = vadd.f32 %v256, %v314
      %v328 = vadd.f32 %v257, %v314
      %v329 = vadd.f32 %v258, %v314
      %v330 = vadd.f32 %v259, %v314
      %v331 = vadd.f32 %v260, %v314
      %v332 = vadd.f32 %v261, %v314
      %v333 = vadd.f32 %v262, %v314
      %v334 = vadd.f32 %v263, %v314
      %v335 = vadd.f32 %v264, %v314
      %v336 = vadd.f32 %v265, %v314
      %v337 = vadd.f32 %v266, %v314
      %v338 = vadd.f32 %v267, %v314
      %v339 = vadd.f32 %v268, %v314
      %v340 = vadd.f32 %v269, %v314
      %v341 = vadd.f32 %v270, %v314
      %v342 = vadd.f32 %v271, %v314
      %v343 = vadd.f32 %v272, %v314
      %v344 = vadd.f32 %v273, %v314
      %v345 = vadd.f32 %v274, %v314
      %v346 = vadd.f32 %v275, %v314
      %v347 = vadd.f32 %v276, %v314
      %v348 = vadd.f32 %v277, %v314
      %v349 = vadd.f32 %v278, %v314
      %v350 = vadd.f32 %v279, %v314
      %v351 = vadd.f32 %v280, %v314
      %v352 = vadd.f32 %v281, %v314
      %v353 = vadd.f32 %v282, %v314
      %v354 = vadd.f32 %v283, %v314
      %v355 = vadd.f32 %v284, %v314
      %v356 = vadd.f32 %v285, %v314
      %v357 = vadd.f32 %v286, %v314
      %v358 = vadd.f32 %v287, %v314
      %v359 = vadd.f32 %v288, %v314
      %v360 = vadd.f32 %v289, %v314
      %v361 = vadd.f32 %v290, %v314
      %v362 = vadd.f32 %v291, %v314
      %v363 = vadd.f32 %v292, %v314
      %v364 = vadd.f32 %v293, %v314
      %v365 = vadd.f32 %v294, %v314
      %v366 = vadd.f32 %v295, %v314
      %v367 = vadd.f32 %v296, %v314
      %v368 = vadd.f32 %v297, %v314
      %v369 = vadd.f32 %v298, %v314
      %v370 = vadd.f32 %v299, %v314
      %v371 = vadd.f32 %v300, %v314
      %v372 = vadd.f32 %v301, %v314
      %v373 = vadd.f32 %v302, %v314
      %v374 = vadd.f32 %v303, %v314
      %v375 = vadd.f32 %v304, %v314
      %v376 = vadd.f32 %v305, %v314
      %v377 = vadd.f32 %v306, %v314
      %v378 = vadd.f32 %v307, %v314
      %v379 = vadd.f32 %v308, %v314
      %v380 = vmax.f32 %v316, 0.0
      %v381 = vmax.f32 %v317, 0.0
      %v382 = vmax.f32 %v318, 0.0
      %v383 = vmax.f32 %v319, 0.0
      %v384 = vmax.f32 %v320, 0.0
      %v385 = vmax.f32 %v321, 0.0
      %v386 = vmax.f32 %v322, 0.0
      %v387 = vmax.f32 %v323, 0.0
      %v388 = vmax.f32 %v324, 0.0
      %v389 = vmax.f32 %v325, 0.0
      %v390 = vmax.f32 %v326, 0.0
      %v391 = vmax.f32 %v327, 0.0
      %v392 = vmax.f32 %v328, 0.0
      %v393 = vmax.f32 %v329, 0.0
      %v394 = vmax.f32 %v330, 0.0
      %v395 = vmax.f32 %v331, 0.0
      %v396 = vmax.f32 %v332, 0.0
      %v397 = vmax.f32 %v333, 0.0
      %v398 = vmax.f32 %v334, 0.0
      %v399 = vmax.f32 %v335, 0.0
      %v400 = vmax.f32 %v336, 0.0
      %v401 = vmax.f32 %v337, 0.0
      %v402 = vmax.f32 %v338, 0.0
      %v403 = vmax.f32 %v339, 0.0
      %v404 = vmax.f32 %v340, 0.0
      %v405 = vmax.f32 %v341, 0.0
      %v406 = vmax.f32 %v342, 0.0
      %v407 = vmax.f32 %v343, 0.0
      %v408 = vmax.f32 %v344, 0.0
      %v409 = vmax.f32 %v345, 0.0
      %v410 = vmax.f32 %v346, 0.0
      %v411 = vmax.f32 %v347, 0.0
      %v412 = vmax.f32 %v348, 0.0
      %v413 = vmax.f32 %v349, 0.0
      %v414 = vmax.f32 %v350, 0.0
      %v415 = vmax.f32 %v351, 0.0
      %v416 = vmax.f32 %v352, 0.0
      %v417 = vmax.f32 %v353, 0.0
      %v418 = vmax.f32 %v354, 0.0
      %v419 = vmax.f32 %v355, 0.0
      %v420 = vmax.f32 %v356, 0.0
      %v421 = vmax.f32 %v357, 0.0
      %v422 = vmax.f32 %v358, 0.0
      %v423 = vmax.f32 %v359, 0.0
      %v424 = vmax.f32 %v360, 0.0
      %v425 = vmax.f32 %v361, 0.0
      %v426 = vmax.f32 %v362, 0.0
      %v427 = vmax.f32 %v363, 0.0
      %v428 = vmax.f32 %v364, 0.0
      %v429 = vmax.f32 %v365, 0.0
      %v430 = vmax.f32 %v366, 0.0
      %v431 = vmax.f32 %v367, 0.0
      %v432 = vmax.f32 %v368, 0.0
      %v433 = vmax.f32 %v369, 0.0
      %v434 = vmax.f32 %v370, 0.0
      %v435 = vmax.f32 %v371, 0.0
      %v436 = vmax.f32 %v372, 0.0
      %v437 = vmax.f32 %v373, 0.0
      %v438 = vmax.f32 %v374, 0.0
      %v439 = vmax.f32 %v375, 0.0
      %v440 = vmax.f32 %v376, 0.0
      %v441 = vmax.f32 %v377, 0.0
      %v442 = vmax.f32 %v378, 0.0
      %v443 = vmax.f32 %v379, 0.0
      %444 = vst [vmem:[%s172] sm:$0xff] %v380
      %445 = vst [vmem:[%s172 + $0x8] sm:$0xff] %v381
      %446 = vst [vmem:[%s172 + $0x10] sm:$0xff] %v382
      %447 = vst [vmem:[%s172 + $0x18] sm:$0xff] %v383
      %448 = vst [vmem:[%s172 + $0x20] sm:$0xff] %v384
      %449 = vst [vmem:[%s172 + $0x28] sm:$0xff] %v385
      %450 = vst [vmem:[%s172 + $0x30] sm:$0xff] %v386
      %451 = vst [vmem:[%s172 + $0x38] sm:$0xff] %v387
      %452 = vst [vmem:[%s172 + $0x40] sm:$0xff] %v388
      %453 = vst [vmem:[%s172 + $0x48] sm:$0xff] %v389
      %454 = vst [vmem:[%s172 + $0x50] sm:$0xff] %v390
      %455 = vst [vmem:[%s172 + $0x58] sm:$0xff] %v391
      %456 = vst [vmem:[%s172 + $0x60] sm:$0xff] %v392
      %457 = vst [vmem:[%s172 + $0x68] sm:$0xff] %v393
      %458 = vst [vmem:[%s172 + $0x70] sm:$0xff] %v394
      %459 = vst [vmem:[%s172 + $0x78] sm:$0xff] %v395
      %460 = vst [vmem:[%s172 + $0x80] sm:$0xff] %v396
      %461 = vst [vmem:[%s172 + $0x88] sm:$0xff] %v397
      %462 = vst [vmem:[%s172 + $0x90] sm:$0xff] %v398
      %463 = vst [vmem:[%s172 + $0x98] sm:$0xff] %v399
      %464 = vst [vmem:[%s172 + $0xa0] sm:$0xff] %v400
      %465 = vst [vmem:[%s172 + $0xa8] sm:$0xff] %v401
      %466 = vst [vmem:[%s172 + $0xb0] sm:$0xff] %v402
      %467 = vst [vmem:[%s172 + $0xb8] sm:$0xff] %v403
      %468 = vst [vmem:[%s172 + $0xc0] sm:$0xff] %v404
      %469 = vst [vmem:[%s172 + $0xc8] sm:$0xff] %v405
      %470 = vst [vmem:[%s172 + $0xd0] sm:$0xff] %v406
      %471 = vst [vmem:[%s172 + $0xd8] sm:$0xff] %v407
      %472 = vst [vmem:[%s172 + $0xe0] sm:$0xff] %v408
      %473 = vst [vmem:[%s172 + $0xe8] sm:$0xff] %v409
      %474 = vst [vmem:[%s172 + $0xf0] sm:$0xff] %v410
      %475 = vst [vmem:[%s172 + $0xf8] sm:$0xff] %v411
      %476 = vst [vmem:[%s172 + $0x100] sm:$0xff] %v412
      %477 = vst [vmem:[%s172 + $0x108] sm:$0xff] %v413
      %478 = vst [vmem:[%s172 + $0x110] sm:$0xff] %v414
      %479 = vst [vmem:[%s172 + $0x118] sm:$0xff] %v415
      %480 = vst [vmem:[%s172 + $0x120] sm:$0xff] %v416
      %481 = vst [vmem:[%s172 + $0x128] sm:$0xff] %v417
      %482 = vst [vmem:[%s172 + $0x130] sm:$0xff] %v418
      %483 = vst [vmem:[%s172 + $0x138] sm:$0xff] %v419
      %484 = vst [vmem:[%s172 + $0x140] sm:$0xff] %v420
      %485 = vst [vmem:[%s172 + $0x148] sm:$0xff] %v421
      %486 = vst [vmem:[%s172 + $0x150] sm:$0xff] %v422
      %487 = vst [vmem:[%s172 + $0x158] sm:$0xff] %v423
      %488 = vst [vmem:[%s172 + $0x160] sm:$0xff] %v424
      %489 = vst [vmem:[%s172 + $0x168] sm:$0xff] %v425
      %490 = vst [vmem:[%s172 + $0x170] sm:$0xff] %v426
      %491 = vst [vmem:[%s172 + $0x178] sm:$0xff] %v427
      %492 = vst [vmem:[%s172 + $0x180] sm:$0xff] %v428
      %493 = vst [vmem:[%s172 + $0x188] sm:$0xff] %v429
      %494 = vst [vmem:[%s172 + $0x190] sm:$0xff] %v430
      %495 = vst [vmem:[%s172 + $0x198] sm:$0xff] %v431
      %496 = vst [vmem:[%s172 + $0x1a0] sm:$0xff] %v432
      %497 = vst [vmem:[%s172 + $0x1a8] sm:$0xff] %v433
      %498 = vst [vmem:[%s172 + $0x1b0] sm:$0xff] %v434
      %499 = vst [vmem:[%s172 + $0x1b8] sm:$0xff] %v435
      %500 = vst [vmem:[%s172 + $0x1c0] sm:$0xff] %v436
      %501 = vst [vmem:[%s172 + $0x1c8] sm:$0xff] %v437
      %502 = vst [vmem:[%s172 + $0x1d0] sm:$0xff] %v438
      %503 = vst [vmem:[%s172 + $0x1d8] sm:$0xff] %v439
      %504 = vst [vmem:[%s172 + $0x1e0] sm:$0xff] %v440
      %505 = vst [vmem:[%s172 + $0x1e8] sm:$0xff] %v441
      %506 = vst [vmem:[%s172 + $0x1f0] sm:$0xff] %v442
      %507 = vst [vmem:[%s172 + $0x1f8] sm:$0xff] %v443
      %s508 = smul.u32 64, %s14
      %p509 = scmp.lt.s32.totalorder %s508, 127
      %s510 = scalar_select %p509, %s508, 127
      %s511 = smul.addr %s510, 8
      %s512 = scalar_lea.vmem %s3, %s511
      // Predicated region
      $region33: #{conv_bn_relu.3} parent=31 // pred_check
        %p513 = pneg %p100
      $region34: #{conv_bn_relu.3} parent=31 // pred_check_branch
        %515 = sbr.rel (%p513) target = $region36
      $region35: #{conv_bn_relu.3} parent=31 // pred_region
        %s516 = smul.u32 64, %s14
      $region36: #{conv_bn_relu.3} parent=31 // pred_fallthru
        _
    $region32: #{conv_bn_relu.3} parent=5 // pred_fallthru
      _
    %p517 = scmp.le.s32.totalorder 2, %s9
    // Predicated region
    $region37: #{conv_bn_relu.3} parent=5 // pred_check
      %p518 = pneg %p517
    $region38: #{conv_bn_relu.3} parent=5 // pred_check_branch
      %520 = sbr.rel (%p518) target = $region40
    $region39: #{conv_bn_relu.3} parent=5 // pred_region
      %s521 = ssub.s32 %s9, 2
      // Predicated region
      $region41: #{conv_bn_relu.3} parent=39 // pred_check
        %p522 = pneg %p106
      $region42: #{conv_bn_relu.3} parent=39 // pred_check_branch
        %524 = sbr.rel (%p522) target = $region44
      $region43: #{conv_bn_relu.3} parent=39 // pred_region
        %s525 = smul.u32 64, %s15
        %p526 = scmp.lt.s32.totalorder %s525, 127
        %s527 = scalar_select %p526, %s525, 127
        %s528 = smul.addr %s527, 8
        %s529 = scalar_lea.vmem %s3, %s528
      $region44: #{conv_bn_relu.3} parent=39 // pred_fallthru
        _
    $region40: #{conv_bn_relu.3} parent=5 // pred_fallthru
      _
  $region6: #{conv_bn_relu.3} parent=0 // loop_footer
    %s13 = sadd.s32 1, %s9
  $region7: #{conv_bn_relu.3} parent=0 // loop_footer_branch
    %8 = sbr.rel target = $region3
  $region8: #{conv_bn_relu.3} parent=0 // loop_exit
    _

// kernel: conv_bn_relu.2
$region0: #{conv_bn_relu.2}
  #allocation0 [shape = 'u32[]', space=smem, size = 0x4, offset = 0x4, fixed_abs, tag = 'smem constant byte address 0x4 - core index']
  #allocation1 [shape = 'u32[144,128]{1,0:T(1,128)}', space=vmem, size = 0x12000, scoped, tag = 'internal scratch']
  %s0 = inlined_call_operand.vmem [shape: bf16[1024,128], index: 0, kind: input, shape index: {}]
  %s1 = inlined_call_operand.vmem [shape: bf16[128,128], index: 1, kind: input, shape index: {}]
  %s2 = inlined_call_operand.vmem [shape: f32[1024,128], index: 2, kind: output, shape index: {0}]
  %s3 = inlined_call_operand.vmem [shape: f32[2,2,128], index: 3, kind: output, shape index: {1}]
  %4 = xla_tuple %s2, %s3
  %s5 = sld [smem:[#allocation0]]
  $region49: #{conv_bn_relu.2} parent=0
    _
  %s7 = ssub.s32 1, %s5
  %s8 = scalar_select 0, %s7, %s5
  loop: start=0, step=1, limit=4
  $region2: #{conv_bn_relu.2} parent=0 // loop_pre_header
    _
  $region3: #{conv_bn_relu.2} parent=0 // loop_header
    %s10 = sphi 0, %s14
    %p11 = scmp.ge.s32.totalorder %s10, 4
    %s20 = sphi 0, %s22
    %s23 = sphi 0, %s20
    %s24 = sphi 0, %s23
    %s40 = sphi 0, %s24
    %s44 = sphi 0, %s44
    %s46 = sphi 0, %s44
    %s47 = sphi 0, %s46
    %s61 = sphi 0, %s47
    %s67 = sphi 0, %s69
    %s70 = sphi 0, %s67
    %s71 = sphi 0, %s70
    %s87 = sphi 0, %s71
    %s93 = sphi 0, %s95
    %s96 = sphi 0, %s93
    %s97 = sphi 0, %s96
    %s113 = sphi 0, %s97
  $region4: #{conv_bn_relu.2} parent=0 // loop_header_branch
    %13 = sbr.rel (%p11) target = $region8
  $region5: #{conv_bn_relu.2} parent=0 // loop_body
    %s15 = ssub.s32 %s10, 1
    %s16 = ssub.s32 %s10, 2
    %s17 = sadd.s32 %s10, 1
    %s18 = ssub.s32 %s10, %s17
    %p19 = scmp.eq.s32.totalorder %s18, 0
    %s21 = sadd.s32 %s20, 1
    %s22 = scalar_select %p19, %s20, %s21
    %p25 = pneg %p19
    %p26 = scmp.eq.s32.totalorder %s10, 1
    %p27 = por %p25, %p26
    %p28 = scmp.ne.s32.totalorder %s20, %s23
    %p29 = scmp.eq.s32.totalorder %s10, 0
    %p30 = por %p28, %p29
    %p31 = scmp.ne.s32.totalorder %s20, %s23
    %p32 = scmp.eq.s32.totalorder %s15, 1
    %p33 = por %p31, %p32
    %p34 = scmp.ne.s32.totalorder %s23, %s24
    %p35 = scmp.eq.s32.totalorder %s15, 0
    %p36 = por %p34, %p35
    %p37 = scmp.ne.s32.totalorder %s23, %s24
    %p38 = scmp.eq.s32.totalorder %s16, 1
    %p39 = por %p37, %p38
    %p41 = scmp.ne.s32.totalorder %s24, %s40
    %p42 = scmp.eq.s32.totalorder %s16, 0
    %p43 = por %p41, %p42
    %s45 = sadd.s32 %s44, 1
    %p48 = scmp.eq.s32.totalorder %s10, 1
    %p49 = scmp.ne.s32.totalorder %s44, %s46
    %p50 = scmp.eq.s32.totalorder %s10, 0
    %p51 = por %p49, %p50
    %p52 = scmp.ne.s32.totalorder %s44, %s46
    %p53 = scmp.eq.s32.totalorder %s15, 1
    %p54 = por %p52, %p53
    %p55 = scmp.ne.s32.totalorder %s46, %s47
    %p56 = scmp.eq.s32.totalorder %s15, 0
    %p57 = por %p55, %p56
    %p58 = scmp.ne.s32.totalorder %s46, %s47
    %p59 = scmp.eq.s32.totalorder %s16, 1
    %p60 = por %p58, %p59
    %p62 = scmp.ne.s32.totalorder %s47, %s61
    %p63 = scmp.eq.s32.totalorder %s16, 0
    %p64 = por %p62, %p63
    %s65 = ssub.s32 %s10, %s17
    %p66 = scmp.eq.s32.totalorder %s65, 0
    %s68 = sadd.s32 %s67, 1
    %s69 = scalar_select %p66, %s67, %s68
    %p72 = pneg %p66
    %p73 = scmp.eq.s32.totalorder %s10, 1
    %p74 = por %p72, %p73
    %p75 = scmp.ne.s32.totalorder %s67, %s70
    %p76 = scmp.eq.s32.totalorder %s10, 0
    %p77 = por %p75, %p76
    %p78 = scmp.ne.s32.totalorder %s67, %s70
    %p79 = scmp.eq.s32.totalorder %s15, 1
    %p80 = por %p78, %p79
    %p81 = scmp.ne.s32.totalorder %s70, %s71
    %p82 = scmp.eq.s32.totalorder %s15, 0
    %p83 = por %p81, %p82
    %p84 = scmp.ne.s32.totalorder %s70, %s71
    %p85 = scmp.eq.s32.totalorder %s16, 1
    %p86 = por %p84, %p85
    %p88 = scmp.ne.s32.totalorder %s71, %s87
    %p89 = scmp.eq.s32.totalorder %s16, 0
    %p90 = por %p88, %p89
    %s91 = ssub.s32 %s10, %s17
    %p92 = scmp.eq.s32.totalorder %s91, 0
    %s94 = sadd.s32 %s93, 1
    %s95 = scalar_select %p92, %s93, %s94
    %p98 = pneg %p92
    %p99 = scmp.eq.s32.totalorder %s10, 1
    %p100 = por %p98, %p99
    %p101 = scmp.ne.s32.totalorder %s93, %s96
    %p102 = scmp.eq.s32.totalorder %s10, 0
    %p103 = por %p101, %p102
    %p104 = scmp.ne.s32.totalorder %s93, %s96
    %p105 = scmp.eq.s32.totalorder %s15, 1
    %p106 = por %p104, %p105
    %p107 = scmp.ne.s32.totalorder %s96, %s97
    %p108 = scmp.eq.s32.totalorder %s15, 0
    %p109 = por %p107, %p108
    %p110 = scmp.ne.s32.totalorder %s96, %s97
    %p111 = scmp.eq.s32.totalorder %s16, 1
    %p112 = por %p110, %p111
    %p114 = scmp.ne.s32.totalorder %s97, %s113
    %p115 = scmp.eq.s32.totalorder %s16, 0
    %p116 = por %p114, %p115
    %p117 = scmp.le.s32.totalorder 1, %s10
    %p118 = scmp.lt.s32.totalorder %s10, 3
    %p119 = pnand %p117, %p118
    %p120 = pneg %p119
    // Predicated region
    $region9: #{conv_bn_relu.2} parent=5 // pred_check
      _
    $region10: #{conv_bn_relu.2} parent=5 // pred_check_branch
      %122 = sbr.rel (%p119) target = $region12
    $region11: #{conv_bn_relu.2} parent=5 // pred_region
      %s123 = ssub.s32 %s10, 1
      // Predicated region
      $region13: #{conv_bn_relu.2} parent=11 // pred_check
        %p124 = pneg %p57
      $region14: #{conv_bn_relu.2} parent=11 // pred_check_branch
        %126 = sbr.rel (%p124) target = $region16
      $region15: #{conv_bn_relu.2} parent=11 // pred_region
        _
      $region16: #{conv_bn_relu.2} parent=11 // pred_fallthru
        _
    $region12: #{conv_bn_relu.2} parent=5 // pred_fallthru
      _
    %p127 = scmp.lt.s32.totalorder %s10, 2
    // Predicated region
    $region17: #{conv_bn_relu.2} parent=5 // pred_check
      %p128 = pneg %p127
    $region18: #{conv_bn_relu.2} parent=5 // pred_check_branch
      %130 = sbr.rel (%p128) target = $region20
    $region19: #{conv_bn_relu.2} parent=5 // pred_region
      // Predicated region
      $region21: #{conv_bn_relu.2} parent=19 // pred_check
        %p131 = pneg %p30
      $region22: #{conv_bn_relu.2} parent=19 // pred_check_branch
        %133 = sbr.rel (%p131) target = $region24
      $region23: #{conv_bn_relu.2} parent=19 // pred_region
        %s134 = smul.u32 64, %s10
        %p135 = scmp.lt.s32.totalorder %s134, 127
        %s136 = scalar_select %p135, %s134, 127
        %s137 = smul.addr %s136, 4
        %s138 = scalar_lea.vmem %s0, %s137
        %s139 = smul.u32 64, %s10
      $region24: #{conv_bn_relu.2} parent=19 // pred_fallthru
        _
    $region20: #{conv_bn_relu.2} parent=5 // pred_fallthru
      _
    %p140 = scmp.le.s32.totalorder 1, %s10
    %p141 = scmp.lt.s32.totalorder %s10, 3
    %p142 = pnand %p140, %p141
    %p143 = pneg %p142
    // Predicated region
    $region25: #{conv_bn_relu.2} parent=5 // pred_check
      _
    $region26: #{conv_bn_relu.2} parent=5 // pred_check_branch
      %145 = sbr.rel (%p142) target = $region28
    $region27: #{conv_bn_relu.2} parent=5 // pred_region
      %s146 = ssub.s32 %s10, 1
      %s147 = smul.u32 64, %s15
      %p148 = scmp.lt.s32.totalorder %s147, 127
      %s149 = scalar_select %p148, %s147, 127
      %s150 = smul.addr %s149, 4
      %s151 = scalar_lea.vmem %s0, %s150
      %p152 = pneg %p36
      %p153 = pneg %p33
      %p154 = pneg %p57
      %p155 = pneg %p54
      %p156 = pneg %p83
      %p157 = pneg %p80
      %s158 = smul.u32 64, %s15
      %p159 = scmp.lt.s32.totalorder %s158, 127
      %s160 = scalar_select %p159, %s158, 127
      %s161 = smul.addr %s160, 8
      %s162 = scalar_lea.vmem %s2, %s161
      %p163 = pneg %p109
      %p164 = pneg %p106
      %p165 = scmp.lt.s32.totalorder %s15, 1
      %s166 = scalar_select %p165, %s15, 1
      %s167 = smul.addr %s166, 2
      %s168 = scalar_lea.vmem %s3, %s167
      %s169 = smul.u32 64, %s15
      %p170 = scmp.lt.s32.totalorder %s169, 127
      %s171 = scalar_select %p170, %s169, 127
      %s172 = smul.addr %s171, 4
      %s173 = scalar_lea.vmem %s0, %s172
      %s174 = smul.u32 64, %s15
      %s175 = smul.u32 64, %s15
      %p176 = scmp.lt.s32.totalorder %s175, 127
      %s177 = scalar_select %p176, %s175, 127
      %s178 = smul.addr %s177, 8
      %s179 = scalar_lea.vmem %s2, %s178
      %s180 = smul.u32 64, %s15
      %p181 = scmp.lt.s32.totalorder %s15, 1
      %s182 = scalar_select %p181, %s15, 1
      %s183 = smul.addr %s182, 2
      %s184 = scalar_lea.vmem %s3, %s183
      %v186 = vld [vmem:[%s173] sm:$0xf]
      %v187 = vld [vmem:[%s173 + $0x4] sm:$0xf]
      %v188 = vld [vmem:[%s173 + $0x8] sm:$0xf]
      %v189 = vld [vmem:[%s173 + $0xc] sm:$0xf]
      %v190 = vld [vmem:[%s173 + $0x10] sm:$0xf]
      %v191 = vld [vmem:[%s173 + $0x14] sm:$0xf]
      %v192 = vld [vmem:[%s173 + $0x18] sm:$0xf]
      %v193 = vld [vmem:[%s173 + $0x1c] sm:$0xf]
      %v194 = vld [vmem:[%s173 + $0x20] sm:$0xf]
      %v195 = vld [vmem:[%s173 + $0x24] sm:$0xf]
      %v196 = vld [vmem:[%s173 + $0x28] sm:$0xf]
      %v197 = vld [vmem:[%s173 + $0x2c] sm:$0xf]
      %v198 = vld [vmem:[%s173 + $0x30] sm:$0xf]
      %v199 = vld [vmem:[%s173 + $0x34] sm:$0xf]
      %v200 = vld [vmem:[%s173 + $0x38] sm:$0xf]
      %v201 = vld [vmem:[%s173 + $0x3c] sm:$0xf]
      %v202 = vld [vmem:[%s173 + $0x40] sm:$0xf]
      %v203 = vld [vmem:[%s173 + $0x44] sm:$0xf]
      %v204 = vld [vmem:[%s173 + $0x48] sm:$0xf]
      %v205 = vld [vmem:[%s173 + $0x4c] sm:$0xf]
      %v206 = vld [vmem:[%s173 + $0x50] sm:$0xf]
      %v207 = vld [vmem:[%s173 + $0x54] sm:$0xf]
      %v208 = vld [vmem:[%s173 + $0x58] sm:$0xf]
      %v209 = vld [vmem:[%s173 + $0x5c] sm:$0xf]
      %v210 = vld [vmem:[%s173 + $0x60] sm:$0xf]
      %v211 = vld [vmem:[%s173 + $0x64] sm:$0xf]
      %v212 = vld [vmem:[%s173 + $0x68] sm:$0xf]
      %v213 = vld [vmem:[%s173 + $0x6c] sm:$0xf]
      %v214 = vld [vmem:[%s173 + $0x70] sm:$0xf]
      %v215 = vld [vmem:[%s173 + $0x74] sm:$0xf]
      %v216 = vld [vmem:[%s173 + $0x78] sm:$0xf]
      %v217 = vld [vmem:[%s173 + $0x7c] sm:$0xf]
      %v218 = vld [vmem:[%s173 + $0x80] sm:$0xf]
      %v219 = vld [vmem:[%s173 + $0x84] sm:$0xf]
      %v220 = vld [vmem:[%s173 + $0x88] sm:$0xf]
      %v221 = vld [vmem:[%s173 + $0x8c] sm:$0xf]
      %v222 = vld [vmem:[%s173 + $0x90] sm:$0xf]
      %v223 = vld [vmem:[%s173 + $0x94] sm:$0xf]
      %v224 = vld [vmem:[%s173 + $0x98] sm:$0xf]
      %v225 = vld [vmem:[%s173 + $0x9c] sm:$0xf]
      %v226 = vld [vmem:[%s173 + $0xa0] sm:$0xf]
      %v227 = vld [vmem:[%s173 + $0xa4] sm:$0xf]
      %v228 = vld [vmem:[%s173 + $0xa8] sm:$0xf]
      %v229 = vld [vmem:[%s173 + $0xac] sm:$0xf]
      %v230 = vld [vmem:[%s173 + $0xb0] sm:$0xf]
      %v231 = vld [vmem:[%s173 + $0xb4] sm:$0xf]
      %v232 = vld [vmem:[%s173 + $0xb8] sm:$0xf]
      %v233 = vld [vmem:[%s173 + $0xbc] sm:$0xf]
      %v234 = vld [vmem:[%s173 + $0xc0] sm:$0xf]
      %v235 = vld [vmem:[%s173 + $0xc4] sm:$0xf]
      %v236 = vld [vmem:[%s173 + $0xc8] sm:$0xf]
      %v237 = vld [vmem:[%s173 + $0xcc] sm:$0xf]
      %v238 = vld [vmem:[%s173 + $0xd0] sm:$0xf]
      %v239 = vld [vmem:[%s173 + $0xd4] sm:$0xf]
      %v240 = vld [vmem:[%s173 + $0xd8] sm:$0xf]
      %v241 = vld [vmem:[%s173 + $0xdc] sm:$0xf]
      %v242 = vld [vmem:[%s173 + $0xe0] sm:$0xf]
      %v243 = vld [vmem:[%s173 + $0xe4] sm:$0xf]
      %v244 = vld [vmem:[%s173 + $0xe8] sm:$0xf]
      %v245 = vld [vmem:[%s173 + $0xec] sm:$0xf]
      %v246 = vld [vmem:[%s173 + $0xf0] sm:$0xf]
      %v247 = vld [vmem:[%s173 + $0xf4] sm:$0xf]
      %v248 = vld [vmem:[%s173 + $0xf8] sm:$0xf]
      %v249 = vld [vmem:[%s173 + $0xfc] sm:$0xf]
      %v250 = vld [vmem:[%s1] sm:$0xf]
      %v251 = vld [vmem:[%s1 + $0x4] sm:$0xf]
      %v252 = vld [vmem:[%s1 + $0x8] sm:$0xf]
      %v253 = vld [vmem:[%s1 + $0xc] sm:$0xf]
      %v254 = vld [vmem:[%s1 + $0x10] sm:$0xf]
      %v255 = vld [vmem:[%s1 + $0x14] sm:$0xf]
      %v256 = vld [vmem:[%s1 + $0x18] sm:$0xf]
      %v257 = vld [vmem:[%s1 + $0x1c] sm:$0xf]
      %v258 = vld [vmem:[%s1 + $0x20] sm:$0xf]
      %v259 = vld [vmem:[%s1 + $0x24] sm:$0xf]
      %v260 = vld [vmem:[%s1 + $0x28] sm:$0xf]
      %v261 = vld [vmem:[%s1 + $0x2c] sm:$0xf]
      %v262 = vld [vmem:[%s1 + $0x30] sm:$0xf]
      %v263 = vld [vmem:[%s1 + $0x34] sm:$0xf]
      %v264 = vld [vmem:[%s1 + $0x38] sm:$0xf]
      %v265 = vld [vmem:[%s1 + $0x3c] sm:$0xf]
      %v330 = vunpack.c.l.b16 %v186
      %v331 = vunpack.c.l.b16 %v187
      %v332 = vunpack.c.l.b16 %v188
      %v333 = vunpack.c.l.b16 %v189
      %v334 = vunpack.c.l.b16 %v190
      %v335 = vunpack.c.l.b16 %v191
      %v336 = vunpack.c.l.b16 %v192
      %v337 = vunpack.c.l.b16 %v193
      %v338 = vunpack.c.l.b16 %v194
      %v339 = vunpack.c.l.b16 %v195
      %v340 = vunpack.c.l.b16 %v196
      %v341 = vunpack.c.l.b16 %v197
      %v342 = vunpack.c.l.b16 %v198
      %v343 = vunpack.c.l.b16 %v199
      %v344 = vunpack.c.l.b16 %v200
      %v345 = vunpack.c.l.b16 %v201
      %v346 = vunpack.c.l.b16 %v202
      %v347 = vunpack.c.l.b16 %v203
      %v348 = vunpack.c.l.b16 %v204
      %v349 = vunpack.c.l.b16 %v205
      %v350 = vunpack.c.l.b16 %v206
      %v351 = vunpack.c.l.b16 %v207
      %v352 = vunpack.c.l.b16 %v208
      %v353 = vunpack.c.l.b16 %v209
      %v354 = vunpack.c.l.b16 %v210
      %v355 = vunpack.c.l.b16 %v211
      %v356 = vunpack.c.l.b16 %v212
      %v357 = vunpack.c.l.b16 %v213
      %v358 = vunpack.c.l.b16 %v214
      %v359 = vunpack.c.l.b16 %v215
      %v360 = vunpack.c.l.b16 %v216
      %v361 = vunpack.c.l.b16 %v217
      %v362 = vunpack.c.l.b16 %v218
      %v363 = vunpack.c.l.b16 %v219
      %v364 = vunpack.c.l.b16 %v220
      %v365 = vunpack.c.l.b16 %v221
      %v366 = vunpack.c.l.b16 %v222
      %v367 = vunpack.c.l.b16 %v223
      %v368 = vunpack.c.l.b16 %v224
      %v369 = vunpack.c.l.b16 %v225
      %v370 = vunpack.c.l.b16 %v226
      %v371 = vunpack.c.l.b16 %v227
      %v372 = vunpack.c.l.b16 %v228
      %v373 = vunpack.c.l.b16 %v229
      %v374 = vunpack.c.l.b16 %v230
      %v375 = vunpack.c.l.b16 %v231
      %v376 = vunpack.c.l.b16 %v232
      %v377 = vunpack.c.l.b16 %v233
      %v378 = vunpack.c.l.b16 %v234
      %v379 = vunpack.c.l.b16 %v235
      %v380 = vunpack.c.l.b16 %v236
      %v381 = vunpack.c.l.b16 %v237
      %v382 = vunpack.c.l.b16 %v238
      %v383 = vunpack.c.l.b16 %v239
      %v384 = vunpack.c.l.b16 %v240
      %v385 = vunpack.c.l.b16 %v241
      %v386 = vunpack.c.l.b16 %v242
      %v387 = vunpack.c.l.b16 %v243
      %v388 = vunpack.c.l.b16 %v244
      %v389 = vunpack.c.l.b16 %v245
      %v390 = vunpack.c.l.b16 %v246
      %v391 = vunpack.c.l.b16 %v247
      %v392 = vunpack.c.l.b16 %v248
      %v393 = vunpack.c.l.b16 %v249
      %v394 = vpack.c.b16 %v331, %v330
      %v395 = vpack.c.b16 %v333, %v332
      %v396 = vpack.c.b16 %v335, %v334
      %v397 = vpack.c.b16 %v337, %v336
      %v398 = vpack.c.b16 %v339, %v338
      %v399 = vpack.c.b16 %v341, %v340
      %v400 = vpack.c.b16 %v343, %v342
      %v401 = vpack.c.b16 %v345, %v344
      %v402 = vpack.c.b16 %v347, %v346
      %v403 = vpack.c.b16 %v349, %v348
      %v404 = vpack.c.b16 %v351, %v350
      %v405 = vpack.c.b16 %v353, %v352
      %v406 = vpack.c.b16 %v355, %v354
      %v407 = vpack.c.b16 %v357, %v356
      %v408 = vpack.c.b16 %v359, %v358
      %v409 = vpack.c.b16 %v361, %v360
      %v410 = vpack.c.b16 %v363, %v362
      %v411 = vpack.c.b16 %v365, %v364
      %v412 = vpack.c.b16 %v367, %v366
      %v413 = vpack.c.b16 %v369, %v368
      %v414 = vpack.c.b16 %v371, %v370
      %v415 = vpack.c.b16 %v373, %v372
      %v416 = vpack.c.b16 %v375, %v374
      %v417 = vpack.c.b16 %v377, %v376
      %v418 = vpack.c.b16 %v379, %v378
      %v419 = vpack.c.b16 %v381, %v380
      %v420 = vpack.c.b16 %v383, %v382
      %v421 = vpack.c.b16 %v385, %v384
      %v422 = vpack.c.b16 %v387, %v386
      %v423 = vpack.c.b16 %v389, %v388
      %v424 = vpack.c.b16 %v391, %v390
      %v425 = vpack.c.b16 %v393, %v392
      %v474 = vunpack.c.l.b16 %v250
      %v475 = vunpack.c.l.b16 %v251
      %v476 = vunpack.c.l.b16 %v252
      %v477 = vunpack.c.l.b16 %v253
      %v478 = vunpack.c.l.b16 %v254
      %v479 = vunpack.c.l.b16 %v255
      %v480 = vunpack.c.l.b16 %v256
      %v481 = vunpack.c.l.b16 %v257
      %v482 = vunpack.c.l.b16 %v258
      %v483 = vunpack.c.l.b16 %v259
      %v484 = vunpack.c.l.b16 %v260
      %v485 = vunpack.c.l.b16 %v261
      %v486 = vunpack.c.l.b16 %v262
      %v487 = vunpack.c.l.b16 %v263
      %v488 = vunpack.c.l.b16 %v264
      %v489 = vunpack.c.l.b16 %v265
      %v490 = vpack.c.b16 %v475, %v474
      %v491 = vpack.c.b16 %v477, %v476
      %v492 = vpack.c.b16 %v479, %v478
      %v493 = vpack.c.b16 %v481, %v480
      %v494 = vpack.c.b16 %v483, %v482
      %v495 = vpack.c.b16 %v485, %v484
      %v496 = vpack.c.b16 %v487, %v486
      %v497 = vpack.c.b16 %v489, %v488
      %506 = vmatprep.subr.bf16.mxu0 0
      %507 = vmatpush1.bf16.msra.mxu0 %v490
      %508 = vmatprep.subr.bf16.mxu0 0
      %509 = vmatpush1.bf16.msra.mxu0 %v491
      %510 = vmatprep.subr.bf16.mxu0 0
      %511 = vmatpush1.bf16.msra.mxu0 %v492
      %512 = vmatprep.subr.bf16.mxu0 0
      %513 = vmatpush1.bf16.msra.mxu0 %v493
      %514 = vmatprep.subr.bf16.mxu0 0
      %515 = vmatpush1.bf16.msra.mxu0 %v494
      %516 = vmatprep.subr.bf16.mxu0 0
      %517 = vmatpush1.bf16.msra.mxu0 %v495
      %518 = vmatprep.subr.bf16.mxu0 0
      %519 = vmatpush1.bf16.msra.mxu0 %v496
      %520 = vmatprep.subr.bf16.mxu0 0
      %521 = vmatpush1.bf16.msra.mxu0 %v497
      %522 = vmatprep.subr.bf16.mxu0 0
      %523 = vmatpush1.bf16.msra.mxu0 0
      %524 = vmatprep.subr.bf16.mxu0 0
      %525 = vmatpush1.bf16.msra.mxu0 0
      %526 = vmatprep.subr.bf16.mxu0 0
      %527 = vmatpush1.bf16.msra.mxu0 0
      %528 = vmatprep.subr.bf16.mxu0 0
      %529 = vmatpush1.bf16.msra.mxu0 0
      %530 = vmatprep.subr.bf16.mxu0 0
      %531 = vmatpush1.bf16.msra.mxu0 0
      %532 = vmatprep.subr.bf16.mxu0 0
      %533 = vmatpush1.bf16.msra.mxu0 0
      %534 = vmatprep.subr.bf16.mxu0 0
      %535 = vmatpush1.bf16.msra.mxu0 0
      %536 = vmatprep.subr.bf16.mxu0 0
      %537 = vmatpush1.bf16.msra.mxu0 0
      %538 = vmatprep.mubr.bf16.mxu0 0
      %539 = vmatmul.mubr.bf16.gmra.mrb[0].mxu0 %v394
      %v540 = vpop.f32.mrb[0].mxu0
      %v541 = vadd.f32 0.0, %v540
      %v542 = vpop.f32.mrb[0].mxu0
      %v543 = vpop.f32.mrb[0].mxu0
      %v544 = vadd.f32 0.0, %v543
      %v545 = vpop.f32.mrb[0].mxu0
      %546 = vmatprep.mubr.bf16.mxu0 0
      %547 = vmatmul.mubr.bf16.gmra.mrb[0].mxu0 %v395
      %v548 = vpop.f32.mrb[0].mxu0
      %v549 = vadd.f32 0.0, %v548
      %v550 = vpop.f32.mrb[0].mxu0
      %v551 = vpop.f32.mrb[0].mxu0
      %v552 = vadd.f32 0.0, %v551
      %v553 = vpop.f32.mrb[0].mxu0
      %554 = vmatprep.mubr.bf16.mxu0 0
      %555 = vmatmul.mubr.bf16.gmra.mrb[0].mxu0 %v396
      %v556 = vpop.f32.mrb[0].mxu0
      %v557 = vadd.f32 0.0, %v556
      %v558 = vpop.f32.mrb[0].mxu0
      %v559 = vpop.f32.mrb[0].mxu0
      %v560 = vadd.f32 0.0, %v559
      %v561 = vpop.f32.mrb[0].mxu0
      %562 = vmatprep.mubr.bf16.mxu0 0
      %563 = vmatmul.mubr.bf16.gmra.mrb[0].mxu0 %v397
      %v564 = vpop.f32.mrb[0].mxu0
      %v565 = vadd.f32 0.0, %v564
      %v566 = vpop.f32.mrb[0].mxu0
      %v567 = vpop.f32.mrb[0].mxu0
      %v568 = vadd.f32 0.0, %v567
      %v569 = vpop.f32.mrb[0].mxu0
      %570 = vmatprep.mubr.bf16.mxu0 0
      %571 = vmatmul.mubr.bf16.gmra.mrb[0].mxu0 %v398
      %v572 = vpop.f32.mrb[0].mxu0
      %v573 = vadd.f32 0.0, %v572
      %v574 = vpop.f32.mrb[0].mxu0
      %v575 = vpop.f32.mrb[0].mxu0
      %v576 = vadd.f32 0.0, %v575
      %v577 = vpop.f32.mrb[0].mxu0
      %578 = vmatprep.mubr.bf16.mxu0 0
      %579 = vmatmul.mubr.bf16.gmra.mrb[0].mxu0 %v399
      %v580 = vpop.f32.mrb[0].mxu0
      %v581 = vadd.f32 0.0, %v580
      %v582 = vpop.f32.mrb[0].mxu0
      %v583 = vpop.f32.mrb[0].mxu0
      %v584 = vadd.f32 0.0, %v583
      %v585 = vpop.f32.mrb[0].mxu0
      %586 = vmatprep.mubr.bf16.mxu0 0
      %587 = vmatmul.mubr.bf16.gmra.mrb[0].mxu0 %v400
      %v588 = vpop.f32.mrb[0].mxu0
      %v589 = vadd.f32 0.0, %v588
      %v590 = vpop.f32.mrb[0].mxu0
      %v591 = vpop.f32.mrb[0].mxu0
      %v592 = vadd.f32 0.0, %v591
      %v593 = vpop.f32.mrb[0].mxu0
      %594 = vmatprep.mubr.bf16.mxu0 0
      %595 = vmatmul.mubr.bf16.gmra.mrb[0].mxu0 %v401
      %v596 = vpop.f32.mrb[0].mxu0
      %v597 = vadd.f32 0.0, %v596
      %v598 = vpop.f32.mrb[0].mxu0
      %v599 = vpop.f32.mrb[0].mxu0
      %v600 = vadd.f32 0.0, %v599
      %v601 = vpop.f32.mrb[0].mxu0
      %602 = vmatprep.mubr.bf16.mxu0 0
      %603 = vmatmul.mubr.bf16.gmra.mrb[0].mxu0 %v402
      %v604 = vpop.f32.mrb[0].mxu0
      %v605 = vadd.f32 0.0, %v604
      %v606 = vpop.f32.mrb[0].mxu0
      %v607 = vpop.f32.mrb[0].mxu0
      %v608 = vadd.f32 0.0, %v607
      %v609 = vpop.f32.mrb[0].mxu0
      %610 = vmatprep.mubr.bf16.mxu0 0
      %611 = vmatmul.mubr.bf16.gmra.mrb[0].mxu0 %v403
      %v612 = vpop.f32.mrb[0].mxu0
      %v613 = vadd.f32 0.0, %v612
      %v614 = vpop.f32.mrb[0].mxu0
      %v615 = vpop.f32.mrb[0].mxu0
      %v616 = vadd.f32 0.0, %v615
      %v617 = vpop.f32.mrb[0].mxu0
      %618 = vmatprep.mubr.bf16.mxu0 0
      %619 = vmatmul.mubr.bf16.gmra.mrb[0].mxu0 %v404
      %v620 = vpop.f32.mrb[0].mxu0
      %v621 = vadd.f32 0.0, %v620
      %v622 = vpop.f32.mrb[0].mxu0
      %v623 = vpop.f32.mrb[0].mxu0
      %v624 = vadd.f32 0.0, %v623
      %v625 = vpop.f32.mrb[0].mxu0
      %626 = vmatprep.mubr.bf16.mxu0 0
      %627 = vmatmul.mubr.bf16.gmra.mrb[0].mxu0 %v405
      %v628 = vpop.f32.mrb[0].mxu0
      %v629 = vadd.f32 0.0, %v628
      %v630 = vpop.f32.mrb[0].mxu0
      %v631 = vpop.f32.mrb[0].mxu0
      %v632 = vadd.f32 0.0, %v631
      %v633 = vpop.f32.mrb[0].mxu0
      %634 = vmatprep.mubr.bf16.mxu0 0
      %635 = vmatmul.mubr.bf16.gmra.mrb[0].mxu0 %v406
      %v636 = vpop.f32.mrb[0].mxu0
      %v637 = vadd.f32 0.0, %v636
      %v638 = vpop.f32.mrb[0].mxu0
      %v639 = vpop.f32.mrb[0].mxu0
      %v640 = vadd.f32 0.0, %v639
      %v641 = vpop.f32.mrb[0].mxu0
      %642 = vmatprep.mubr.bf16.mxu0 0
      %643 = vmatmul.mubr.bf16.gmra.mrb[0].mxu0 %v407
      %v644 = vpop.f32.mrb[0].mxu0
      %v645 = vadd.f32 0.0, %v644
      %v646 = vpop.f32.mrb[0].mxu0
      %v647 = vpop.f32.mrb[0].mxu0
      %v648 = vadd.f32 0.0, %v647
      %v649 = vpop.f32.mrb[0].mxu0
      %650 = vmatprep.mubr.bf16.mxu0 0
      %651 = vmatmul.mubr.bf16.gmra.mrb[0].mxu0 %v408
      %v652 = vpop.f32.mrb[0].mxu0
      %v653 = vadd.f32 0.0, %v652
      %v654 = vpop.f32.mrb[0].mxu0
      %v655 = vpop.f32.mrb[0].mxu0
      %v656 = vadd.f32 0.0, %v655
      %v657 = vpop.f32.mrb[0].mxu0
      %658 = vmatprep.mubr.bf16.mxu0 0
      %659 = vmatmul.mubr.bf16.gmra.mrb[0].mxu0 %v409
      %v660 = vpop.f32.mrb[0].mxu0
      %v661 = vadd.f32 0.0, %v660
      %v662 = vpop.f32.mrb[0].mxu0
      %v663 = vpop.f32.mrb[0].mxu0
      %v664 = vadd.f32 0.0, %v663
      %v665 = vpop.f32.mrb[0].mxu0
      %666 = vmatprep.mubr.bf16.mxu0 0
      %667 = vmatmul.mubr.bf16.gmra.mrb[0].mxu0 %v410
      %v668 = vpop.f32.mrb[0].mxu0
      %v669 = vadd.f32 0.0, %v668
      %v670 = vpop.f32.mrb[0].mxu0
      %v671 = vpop.f32.mrb[0].mxu0
      %v672 = vadd.f32 0.0, %v671
      %v673 = vpop.f32.mrb[0].mxu0
      %674 = vmatprep.mubr.bf16.mxu0 0
      %675 = vmatmul.mubr.bf16.gmra.mrb[0].mxu0 %v411
      %v676 = vpop.f32.mrb[0].mxu0
      %v677 = vadd.f32 0.0, %v676
      %v678 = vpop.f32.mrb[0].mxu0
      %v679 = vpop.f32.mrb[0].mxu0
      %v680 = vadd.f32 0.0, %v679
      %v681 = vpop.f32.mrb[0].mxu0
      %682 = vmatprep.mubr.bf16.mxu0 0
      %683 = vmatmul.mubr.bf16.gmra.mrb[0].mxu0 %v412
      %v684 = vpop.f32.mrb[0].mxu0
      %v685 = vadd.f32 0.0, %v684
      %v686 = vpop.f32.mrb[0].mxu0
      %v687 = vpop.f32.mrb[0].mxu0
      %v688 = vadd.f32 0.0, %v687
      %v689 = vpop.f32.mrb[0].mxu0
      %690 = vmatprep.mubr.bf16.mxu0 0
      %691 = vmatmul.mubr.bf16.gmra.mrb[0].mxu0 %v413
      %v692 = vpop.f32.mrb[0].mxu0
      %v693 = vadd.f32 0.0, %v692
      %v694 = vpop.f32.mrb[0].mxu0
      %v695 = vpop.f32.mrb[0].mxu0
      %v696 = vadd.f32 0.0, %v695
      %v697 = vpop.f32.mrb[0].mxu0
      %698 = vmatprep.mubr.bf16.mxu0 0
      %699 = vmatmul.mubr.bf16.gmra.mrb[0].mxu0 %v414
      %v700 = vpop.f32.mrb[0].mxu0
      %v701 = vadd.f32 0.0, %v700
      %v702 = vpop.f32.mrb[0].mxu0
      %v703 = vpop.f32.mrb[0].mxu0
      %v704 = vadd.f32 0.0, %v703
      %v705 = vpop.f32.mrb[0].mxu0
      %706 = vmatprep.mubr.bf16.mxu0 0
      %707 = vmatmul.mubr.bf16.gmra.mrb[0].mxu0 %v415
      %v708 = vpop.f32.mrb[0].mxu0
      %v709 = vadd.f32 0.0, %v708
      %v710 = vpop.f32.mrb[0].mxu0
      %v711 = vpop.f32.mrb[0].mxu0
      %v712 = vadd.f32 0.0, %v711
      %v713 = vpop.f32.mrb[0].mxu0
      %714 = vmatprep.mubr.bf16.mxu0 0
      %715 = vmatmul.mubr.bf16.gmra.mrb[0].mxu0 %v416
      %v716 = vpop.f32.mrb[0].mxu0
      %v717 = vadd.f32 0.0, %v716
      %v718 = vpop.f32.mrb[0].mxu0
      %v719 = vpop.f32.mrb[0].mxu0
      %v720 = vadd.f32 0.0, %v719
      %v721 = vpop.f32.mrb[0].mxu0
      %722 = vmatprep.mubr.bf16.mxu0 0
      %723 = vmatmul.mubr.bf16.gmra.mrb[0].mxu0 %v417
      %v724 = vpop.f32.mrb[0].mxu0
      %v725 = vadd.f32 0.0, %v724
      %v726 = vpop.f32.mrb[0].mxu0
      %v727 = vpop.f32.mrb[0].mxu0
      %v728 = vadd.f32 0.0, %v727
      %v729 = vpop.f32.mrb[0].mxu0
      %730 = vmatprep.mubr.bf16.mxu0 0
      %731 = vmatmul.mubr.bf16.gmra.mrb[0].mxu0 %v418
      %v732 = vpop.f32.mrb[0].mxu0
      %v733 = vadd.f32 0.0, %v732
      %v734 = vpop.f32.mrb[0].mxu0
      %v735 = vpop.f32.mrb[0].mxu0
      %v736 = vadd.f32 0.0, %v735
      %v737 = vpop.f32.mrb[0].mxu0
      %738 = vmatprep.mubr.bf16.mxu0 0
      %739 = vmatmul.mubr.bf16.gmra.mrb[0].mxu0 %v419
      %v740 = vpop.f32.mrb[0].mxu0
      %v741 = vadd.f32 0.0, %v740
      %v742 = vpop.f32.mrb[0].mxu0
      %v743 = vpop.f32.mrb[0].mxu0
      %v744 = vadd.f32 0.0, %v743
      %v745 = vpop.f32.mrb[0].mxu0
      %746 = vmatprep.mubr.bf16.mxu0 0
      %747 = vmatmul.mubr.bf16.gmra.mrb[0].mxu0 %v420
      %v748 = vpop.f32.mrb[0].mxu0
      %v749 = vadd.f32 0.0, %v748
      %v750 = vpop.f32.mrb[0].mxu0
      %v751 = vpop.f32.mrb[0].mxu0
      %v752 = vadd.f32 0.0, %v751
      %v753 = vpop.f32.mrb[0].mxu0
      %754 = vmatprep.mubr.bf16.mxu0 0
      %755 = vmatmul.mubr.bf16.gmra.mrb[0].mxu0 %v421
      %v756 = vpop.f32.mrb[0].mxu0
      %v757 = vadd.f32 0.0, %v756
      %v758 = vpop.f32.mrb[0].mxu0
      %v759 = vpop.f32.mrb[0].mxu0
      %v760 = vadd.f32 0.0, %v759
      %v761 = vpop.f32.mrb[0].mxu0
      %762 = vmatprep.mubr.bf16.mxu0 0
      %763 = vmatmul.mubr.bf16.gmra.mrb[0].mxu0 %v422
      %v764 = vpop.f32.mrb[0].mxu0
      %v765 = vadd.f32 0.0, %v764
      %v766 = vpop.f32.mrb[0].mxu0
      %v767 = vpop.f32.mrb[0].mxu0
      %v768 = vadd.f32 0.0, %v767
      %v769 = vpop.f32.mrb[0].mxu0
      %770 = vmatprep.mubr.bf16.mxu0 0
      %771 = vmatmul.mubr.bf16.gmra.mrb[0].mxu0 %v423
      %v772 = vpop.f32.mrb[0].mxu0
      %v773 = vadd.f32 0.0, %v772
      %v774 = vpop.f32.mrb[0].mxu0
      %v775 = vpop.f32.mrb[0].mxu0
      %v776 = vadd.f32 0.0, %v775
      %v777 = vpop.f32.mrb[0].mxu0
      %778 = vmatprep.mubr.bf16.mxu0 0
      %779 = vmatmul.mubr.bf16.gmra.mrb[0].mxu0 %v424
      %v780 = vpop.f32.mrb[0].mxu0
      %v781 = vadd.f32 0.0, %v780
      %v782 = vpop.f32.mrb[0].mxu0
      %v783 = vpop.f32.mrb[0].mxu0
      %v784 = vadd.f32 0.0, %v783
      %v785 = vpop.f32.mrb[0].mxu0
      %786 = vmatprep.mubr.bf16.mxu0 0
      %787 = vmatmul.mubr.bf16.gmra.mrb[0].mxu0 %v425
      %v788 = vpop.f32.mrb[0].mxu0
      %v789 = vadd.f32 0.0, %v788
      %v790 = vpop.f32.mrb[0].mxu0
      %v791 = vpop.f32.mrb[0].mxu0
      %v792 = vadd.f32 0.0, %v791
      %v793 = vpop.f32.mrb[0].mxu0
      %794 = vdwg.mxu0
      %795 = vst [vmem:[%s179] sm:$0xff] %v541
      %796 = vst [vmem:[%s179 + $0x8] sm:$0xff] %v544
      %797 = vst [vmem:[%s179 + $0x10] sm:$0xff] %v549
      %798 = vst [vmem:[%s179 + $0x18] sm:$0xff] %v552
      %799 = vst [vmem:[%s179 + $0x20] sm:$0xff] %v557
      %800 = vst [vmem:[%s179 + $0x28] sm:$0xff] %v560
      %801 = vst [vmem:[%s179 + $0x30] sm:$0xff] %v565
      %802 = vst [vmem:[%s179 + $0x38] sm:$0xff] %v568
      %803 = vst [vmem:[%s179 + $0x40] sm:$0xff] %v573
      %804 = vst [vmem:[%s179 + $0x48] sm:$0xff] %v576
      %805 = vst [vmem:[%s179 + $0x50] sm:$0xff] %v581
      %806 = vst [vmem:[%s179 + $0x58] sm:$0xff] %v584
      %807 = vst [vmem:[%s179 + $0x60] sm:$0xff] %v589
      %808 = vst [vmem:[%s179 + $0x68] sm:$0xff] %v592
      %809 = vst [vmem:[%s179 + $0x70] sm:$0xff] %v597
      %810 = vst [vmem:[%s179 + $0x78] sm:$0xff] %v600
      %811 = vst [vmem:[%s179 + $0x80] sm:$0xff] %v605
      %812 = vst [vmem:[%s179 + $0x88] sm:$0xff] %v608
      %813 = vst [vmem:[%s179 + $0x90] sm:$0xff] %v613
      %814 = vst [vmem:[%s179 + $0x98] sm:$0xff] %v616
      %815 = vst [vmem:[%s179 + $0xa0] sm:$0xff] %v621
      %816 = vst [vmem:[%s179 + $0xa8] sm:$0xff] %v624
      %817 = vst [vmem:[%s179 + $0xb0] sm:$0xff] %v629
      %818 = vst [vmem:[%s179 + $0xb8] sm:$0xff] %v632
      %819 = vst [vmem:[%s179 + $0xc0] sm:$0xff] %v637
      %820 = vst [vmem:[%s179 + $0xc8] sm:$0xff] %v640
      %821 = vst [vmem:[%s179 + $0xd0] sm:$0xff] %v645
      %822 = vst [vmem:[%s179 + $0xd8] sm:$0xff] %v648
      %823 = vst [vmem:[%s179 + $0xe0] sm:$0xff] %v653
      %824 = vst [vmem:[%s179 + $0xe8] sm:$0xff] %v656
      %825 = vst [vmem:[%s179 + $0xf0] sm:$0xff] %v661
      %826 = vst [vmem:[%s179 + $0xf8] sm:$0xff] %v664
      %827 = vst [vmem:[%s179 + $0x100] sm:$0xff] %v669
      %828 = vst [vmem:[%s179 + $0x108] sm:$0xff] %v672
      %829 = vst [vmem:[%s179 + $0x110] sm:$0xff] %v677
      %830 = vst [vmem:[%s179 + $0x118] sm:$0xff] %v680
      %831 = vst [vmem:[%s179 + $0x120] sm:$0xff] %v685
      %832 = vst [vmem:[%s179 + $0x128] sm:$0xff] %v688
      %833 = vst [vmem:[%s179 + $0x130] sm:$0xff] %v693
      %834 = vst [vmem:[%s179 + $0x138] sm:$0xff] %v696
      %835 = vst [vmem:[%s179 + $0x140] sm:$0xff] %v701
      %836 = vst [vmem:[%s179 + $0x148] sm:$0xff] %v704
      %837 = vst [vmem:[%s179 + $0x150] sm:$0xff] %v709
      %838 = vst [vmem:[%s179 + $0x158] sm:$0xff] %v712
      %839 = vst [vmem:[%s179 + $0x160] sm:$0xff] %v717
      %840 = vst [vmem:[%s179 + $0x168] sm:$0xff] %v720
      %841 = vst [vmem:[%s179 + $0x170] sm:$0xff] %v725
      %842 = vst [vmem:[%s179 + $0x178] sm:$0xff] %v728
      %843 = vst [vmem:[%s179 + $0x180] sm:$0xff] %v733
      %844 = vst [vmem:[%s179 + $0x188] sm:$0xff] %v736
      %845 = vst [vmem:[%s179 + $0x190] sm:$0xff] %v741
      %846 = vst [vmem:[%s179 + $0x198] sm:$0xff] %v744
      %847 = vst [vmem:[%s179 + $0x1a0] sm:$0xff] %v749
      %848 = vst [vmem:[%s179 + $0x1a8] sm:$0xff] %v752
      %849 = vst [vmem:[%s179 + $0x1b0] sm:$0xff] %v757
      %850 = vst [vmem:[%s179 + $0x1b8] sm:$0xff] %v760
      %851 = vst [vmem:[%s179 + $0x1c0] sm:$0xff] %v765
      %852 = vst [vmem:[%s179 + $0x1c8] sm:$0xff] %v768
      %853 = vst [vmem:[%s179 + $0x1d0] sm:$0xff] %v773
      %854 = vst [vmem:[%s179 + $0x1d8] sm:$0xff] %v776
      %855 = vst [vmem:[%s179 + $0x1e0] sm:$0xff] %v781
      %856 = vst [vmem:[%s179 + $0x1e8] sm:$0xff] %v784
      %857 = vst [vmem:[%s179 + $0x1f0] sm:$0xff] %v789
      %858 = vst [vmem:[%s179 + $0x1f8] sm:$0xff] %v792
      %v859 = vadd.f32 %v541, %v544
      %v860 = vadd.f32 %v859, %v549
      %v861 = vadd.f32 %v860, %v552
      %v862 = vadd.f32 %v861, %v557
      %v863 = vadd.f32 %v862, %v560
      %v864 = vadd.f32 %v863, %v565
      %v865 = vadd.f32 %v864, %v568
      %v866 = vadd.f32 %v865, %v573
      %v867 = vadd.f32 %v866, %v576
      %v868 = vadd.f32 %v867, %v581
      %v869 = vadd.f32 %v868, %v584
      %v870 = vadd.f32 %v869, %v589
      %v871 = vadd.f32 %v870, %v592
      %v872 = vadd.f32 %v871, %v597
      %v873 = vadd.f32 %v872, %v600
      %v874 = vadd.f32 %v873, %v605
      %v875 = vadd.f32 %v874, %v608
      %v876 = vadd.f32 %v875, %v613
      %v877 = vadd.f32 %v876, %v616
      %v878 = vadd.f32 %v877, %v621
      %v879 = vadd.f32 %v878, %v624
      %v880 = vadd.f32 %v879, %v629
      %v881 = vadd.f32 %v880, %v632
      %v882 = vadd.f32 %v881, %v637
      %v883 = vadd.f32 %v882, %v640
      %v884 = vadd.f32 %v883, %v645
      %v885 = vadd.f32 %v884, %v648
      %v886 = vadd.f32 %v885, %v653
      %v887 = vadd.f32 %v886, %v656
      %v888 = vadd.f32 %v887, %v661
      %v889 = vadd.f32 %v888, %v664
      %v890 = vadd.f32 %v889, %v669
      %v891 = vadd.f32 %v890, %v672
      %v892 = vadd.f32 %v891, %v677
      %v893 = vadd.f32 %v892, %v680
      %v894 = vadd.f32 %v893, %v685
      %v895 = vadd.f32 %v894, %v688
      %v896 = vadd.f32 %v895, %v693
      %v897 = vadd.f32 %v896, %v696
      %v898 = vadd.f32 %v897, %v701
      %v899 = vadd.f32 %v898, %v704
      %v900 = vadd.f32 %v899, %v709
      %v901 = vadd.f32 %v900, %v712
      %v902 = vadd.f32 %v901, %v717
      %v903 = vadd.f32 %v902, %v720
      %v904 = vadd.f32 %v903, %v725
      %v905 = vadd.f32 %v904, %v728
      %v906 = vadd.f32 %v905, %v733
      %v907 = vadd.f32 %v906, %v736
      %v908 = vadd.f32 %v907, %v741
      %v909 = vadd.f32 %v908, %v744
      %v910 = vadd.f32 %v909, %v749
      %v911 = vadd.f32 %v910, %v752
      %v912 = vadd.f32 %v911, %v757
      %v913 = vadd.f32 %v912, %v760
      %v914 = vadd.f32 %v913, %v765
      %v915 = vadd.f32 %v914, %v768
      %v916 = vadd.f32 %v915, %v773
      %v917 = vadd.f32 %v916, %v776
      %v918 = vadd.f32 %v917, %v781
      %v919 = vadd.f32 %v918, %v784
      %v920 = vadd.f32 %v919, %v789
      %v921 = vadd.f32 %v920, %v792
      %v922 = vrot.slane %v921, 4
      %v923 = vadd.f32 %v921, %v922
      %v924 = vrot.slane %v923, 2
      %v925 = vadd.f32 %v923, %v924
      %v926 = vrot.slane %v925, 1
      %v927 = vadd.f32 %v925, %v926
      %v928 = vmul.f32 %v541, %v541
      %v929 = vmul.f32 %v544, %v544
      %v930 = vmul.f32 %v549, %v549
      %v931 = vmul.f32 %v552, %v552
      %v932 = vmul.f32 %v557, %v557
      %v933 = vmul.f32 %v560, %v560
      %v934 = vmul.f32 %v565, %v565
      %v935 = vmul.f32 %v568, %v568
      %v936 = vmul.f32 %v573, %v573
      %v937 = vmul.f32 %v576, %v576
      %v938 = vmul.f32 %v581, %v581
      %v939 = vmul.f32 %v584, %v584
      %v940 = vmul.f32 %v589, %v589
      %v941 = vmul.f32 %v592, %v592
      %v942 = vmul.f32 %v597, %v597
      %v943 = vmul.f32 %v600, %v600
      %v944 = vmul.f32 %v605, %v605
      %v945 = vmul.f32 %v608, %v608
      %v946 = vmul.f32 %v613, %v613
      %v947 = vmul.f32 %v616, %v616
      %v948 = vmul.f32 %v621, %v621
      %v949 = vmul.f32 %v624, %v624
      %v950 = vmul.f32 %v629, %v629
      %v951 = vmul.f32 %v632, %v632
      %v952 = vmul.f32 %v637, %v637
      %v953 = vmul.f32 %v640, %v640
      %v954 = vmul.f32 %v645, %v645
      %v955 = vmul.f32 %v648, %v648
      %v956 = vmul.f32 %v653, %v653
      %v957 = vmul.f32 %v656, %v656
      %v958 = vmul.f32 %v661, %v661
      %v959 = vmul.f32 %v664, %v664
      %v960 = vmul.f32 %v669, %v669
      %v961 = vmul.f32 %v672, %v672
      %v962 = vmul.f32 %v677, %v677
      %v963 = vmul.f32 %v680, %v680
      %v964 = vmul.f32 %v685, %v685
      %v965 = vmul.f32 %v688, %v688
      %v966 = vmul.f32 %v693, %v693
      %v967 = vmul.f32 %v696, %v696
      %v968 = vmul.f32 %v701, %v701
      %v969 = vmul.f32 %v704, %v704
      %v970 = vmul.f32 %v709, %v709
      %v971 = vmul.f32 %v712, %v712
      %v972 = vmul.f32 %v717, %v717
      %v973 = vmul.f32 %v720, %v720
      %v974 = vmul.f32 %v725, %v725
      %v975 = vmul.f32 %v728, %v728
      %v976 = vmul.f32 %v733, %v733
      %v977 = vmul.f32 %v736, %v736
      %v978 = vmul.f32 %v741, %v741
      %v979 = vmul.f32 %v744, %v744
      %v980 = vmul.f32 %v749, %v749
      %v981 = vmul.f32 %v752, %v752
      %v982 = vmul.f32 %v757, %v757
      %v983 = vmul.f32 %v760, %v760
      %v984 = vmul.f32 %v765, %v765
      %v985 = vmul.f32 %v768, %v768
      %v986 = vmul.f32 %v773, %v773
      %v987 = vmul.f32 %v776, %v776
      %v988 = vmul.f32 %v781, %v781
      %v989 = vmul.f32 %v784, %v784
      %v990 = vmul.f32 %v789, %v789
      %v991 = vmul.f32 %v792, %v792
      %v992 = vadd.f32 %v928, %v929
      %v993 = vadd.f32 %v992, %v930
      %v994 = vadd.f32 %v993, %v931
      %v995 = vadd.f32 %v994, %v932
      %v996 = vadd.f32 %v995, %v933
      %v997 = vadd.f32 %v996, %v934
      %v998 = vadd.f32 %v997, %v935
      %v999 = vadd.f32 %v998, %v936
      %v1000 = vadd.f32 %v999, %v937
      %v1001 = vadd.f32 %v1000, %v938
      %v1002 = vadd.f32 %v1001, %v939
      %v1003 = vadd.f32 %v1002, %v940
      %v1004 = vadd.f32 %v1003, %v941
      %v1005 = vadd.f32 %v1004, %v942
      %v1006 = vadd.f32 %v1005, %v943
      %v1007 = vadd.f32 %v1006, %v944
      %v1008 = vadd.f32 %v1007, %v945
      %v1009 = vadd.f32 %v1008, %v946
      %v1010 = vadd.f32 %v1009, %v947
      %v1011 = vadd.f32 %v1010, %v948
      %v1012 = vadd.f32 %v1011, %v949
      %v1013 = vadd.f32 %v1012, %v950
      %v1014 = vadd.f32 %v1013, %v951
      %v1015 = vadd.f32 %v1014, %v952
      %v1016 = vadd.f32 %v1015, %v953
      %v1017 = vadd.f32 %v1016, %v954
      %v1018 = vadd.f32 %v1017, %v955
      %v1019 = vadd.f32 %v1018, %v956
      %v1020 = vadd.f32 %v1019, %v957
      %v1021 = vadd.f32 %v1020, %v958
      %v1022 = vadd.f32 %v1021, %v959
      %v1023 = vadd.f32 %v1022, %v960
      %v1024 = vadd.f32 %v1023, %v961
      %v1025 = vadd.f32 %v1024, %v962
      %v1026 = vadd.f32 %v1025, %v963
      %v1027 = vadd.f32 %v1026, %v964
      %v1028 = vadd.f32 %v1027, %v965
      %v1029 = vadd.f32 %v1028, %v966
      %v1030 = vadd.f32 %v1029, %v967
      %v1031 = vadd.f32 %v1030, %v968
      %v1032 = vadd.f32 %v1031, %v969
      %v1033 = vadd.f32 %v1032, %v970
      %v1034 = vadd.f32 %v1033, %v971
      %v1035 = vadd.f32 %v1034, %v972
      %v1036 = vadd.f32 %v1035, %v973
      %v1037 = vadd.f32 %v1036, %v974
      %v1038 = vadd.f32 %v1037, %v975
      %v1039 = vadd.f32 %v1038, %v976
      %v1040 = vadd.f32 %v1039, %v977
      %v1041 = vadd.f32 %v1040, %v978
      %v1042 = vadd.f32 %v1041, %v979
      %v1043 = vadd.f32 %v1042, %v980
      %v1044 = vadd.f32 %v1043, %v981
      %v1045 = vadd.f32 %v1044, %v982
      %v1046 = vadd.f32 %v1045, %v983
      %v1047 = vadd.f32 %v1046, %v984
      %v1048 = vadd.f32 %v1047, %v985
      %v1049 = vadd.f32 %v1048, %v986
      %v1050 = vadd.f32 %v1049, %v987
      %v1051 = vadd.f32 %v1050, %v988
      %v1052 = vadd.f32 %v1051, %v989
      %v1053 = vadd.f32 %v1052, %v990
      %v1054 = vadd.f32 %v1053, %v991
      %v1055 = vrot.slane %v1054, 4
      %v1056 = vadd.f32 %v1054, %v1055
      %v1057 = vrot.slane %v1056, 2
      %v1058 = vadd.f32 %v1056, %v1057
      %v1059 = vrot.slane %v1058, 1
      %v1060 = vadd.f32 %v1058, %v1059
      %vm1061 = vcmask 1040384
      %v1062 = vsel %vm1061, %v927, %v1060
      %1063 = vst [vmem:[%s184] sm:$0x3] %v1062
      %s1064 = smul.u32 64, %s15
      %p1065 = scmp.lt.s32.totalorder %s1064, 127
      %s1066 = scalar_select %p1065, %s1064, 127
      %s1067 = smul.addr %s1066, 8
      %s1068 = scalar_lea.vmem %s2, %s1067
      %p1069 = scmp.lt.s32.totalorder %s15, 1
      %s1070 = scalar_select %p1069, %s15, 1
      %s1071 = smul.addr %s1070, 2
      %s1072 = scalar_lea.vmem %s3, %s1071
      // Predicated region
      $region29: #{conv_bn_relu.2} parent=27 // pred_check
        %p1073 = pneg %p80
      $region30: #{conv_bn_relu.2} parent=27 // pred_check_branch
        %1075 = sbr.rel (%p1073) target = $region32
      $region31: #{conv_bn_relu.2} parent=27 // pred_region
        %s1076 = smul.u32 64, %s15
      $region32: #{conv_bn_relu.2} parent=27 // pred_fallthru
        _
      // Predicated region
      $region33: #{conv_bn_relu.2} parent=27 // pred_check
        %p1077 = pneg %p106
      $region34: #{conv_bn_relu.2} parent=27 // pred_check_branch
        %1079 = sbr.rel (%p1077) target = $region36
      $region35: #{conv_bn_relu.2} parent=27 // pred_region
        _
      $region36: #{conv_bn_relu.2} parent=27 // pred_fallthru
        _
    $region28: #{conv_bn_relu.2} parent=5 // pred_fallthru
      _
    %p1080 = scmp.le.s32.totalorder 2, %s10
    // Predicated region
    $region37: #{conv_bn_relu.2} parent=5 // pred_check
      %p1081 = pneg %p1080
    $region38: #{conv_bn_relu.2} parent=5 // pred_check_branch
      %1083 = sbr.rel (%p1081) target = $region40
    $region39: #{conv_bn_relu.2} parent=5 // pred_region
      %s1084 = ssub.s32 %s10, 2
      // Predicated region
      $region41: #{conv_bn_relu.2} parent=39 // pred_check
        %p1085 = pneg %p86
      $region42: #{conv_bn_relu.2} parent=39 // pred_check_branch
        %1087 = sbr.rel (%p1085) target = $region44
      $region43: #{conv_bn_relu.2} parent=39 // pred_region
        %s1088 = smul.u32 64, %s16
        %p1089 = scmp.lt.s32.totalorder %s1088, 127
        %s1090 = scalar_select %p1089, %s1088, 127
        %s1091 = smul.addr %s1090, 8
        %s1092 = scalar_lea.vmem %s2, %s1091
      $region44: #{conv_bn_relu.2} parent=39 // pred_fallthru
        _
      // Predicated region
      $region45: #{conv_bn_relu.2} parent=39 // pred_check
        %p1093 = pneg %p112
      $region46: #{conv_bn_relu.2} parent=39 // pred_check_branch
        %1095 = sbr.rel (%p1093) target = $region48
      $region47: #{conv_bn_relu.2} parent=39 // pred_region
        %p1096 = scmp.lt.s32.totalorder %s16, 1
        %s1097 = scalar_select %p1096, %s16, 1
        %s1098 = smul.addr %s1097, 2
        %s1099 = scalar_lea.vmem %s3, %s1098
      $region48: #{conv_bn_relu.2} parent=39 // pred_fallthru
        _
    $region40: #{conv_bn_relu.2} parent=5 // pred_fallthru
      _
  $region6: #{conv_bn_relu.2} parent=0 // loop_footer
    %s14 = sadd.s32 1, %s10
  $region7: #{conv_bn_relu.2} parent=0 // loop_footer_branch
    %9 = sbr.rel target = $region3
  $region8: #{conv_bn_relu.2} parent=0 // loop_exit
    _

</llo_original>
